<compile_context>
chip_gen: v7x
topology: tpu7x:2x2x1
jax: 0.10.0
libtpu: 0.0.40
codegen_flags: <defaults>
</compile_context>

<pallas_src>
import functools
import math

import jax
import jax.numpy as jnp
from jax.experimental import pallas as pl
from jax.experimental.pallas import tpu as pltpu

# -------------------- config (small, deterministic) --------------------
BATCH = 2
SEQ = 8
HIDDEN = 32
NUM_HEADS = 4
HEAD_DIM = HIDDEN // NUM_HEADS
INTERMEDIATE = 64
NUM_LAYERS = 2
LN_EPS = 1e-12  # BERT default


def _layer_norm(res, gamma, beta):
    # One-pass statistics: var = E[x^2] - mean^2 (half the cross-lane reductions).
    mean = jnp.mean(res, axis=-1, keepdims=True)
    msq = jnp.mean(res * res, axis=-1, keepdims=True)
    var = msq - mean * mean
    return (res - mean) * jax.lax.rsqrt(var + LN_EPS) * gamma + beta


# -------------------- fused encoder kernel --------------------
def encoder_kernel(x_ref, mask_ref, wqkv_ref, wo_ref, w1_ref, b1_ref, w2_ref,
                   pvec_ref, o_ref, *, num_heads, head_dim, seq, hidden):
    """One (batch, layer) grid step on a VMEM-resident (S, H) activation slab.

    pvec rows: [bq(scaled), bk, bv, bo, ln1_g, ln1_b, b2, ln2_g, ln2_b].
    """
    layer = pl.program_id(1)

    # Layer 0 of this batch: seed the resident activation slab from the input.
    @pl.when(layer == 0)
    def _():
        o_ref[...] = x_ref[...]

    x = o_ref[...].astype(jnp.float32)          # (S, H), carried across layers
    mask = mask_ref[...].astype(jnp.float32)    # (1, S) additive key mask

    pv = pvec_ref[...]                          # (9, H) packed f32 params
    bq, bk, bv, bo = pv[0:1], pv[1:2], pv[2:3], pv[3:4]
    g1, be1 = pv[4:5], pv[5:6]
    b2 = pv[6:7]
    g2, be2 = pv[7:8], pv[8:9]

    # ---------------- self-attention ----------------
    x_mm = x.astype(jnp.bfloat16)               # bf16 MXU inputs, f32 accumulation
    # 1/sqrt(head_dim) already folded into wq / bq at pack time.
    q = jnp.dot(x_mm, wqkv_ref[0], preferred_element_type=jnp.float32) + bq
    k = jnp.dot(x_mm, wqkv_ref[1], preferred_element_type=jnp.float32) + bk
    v = jnp.dot(x_mm, wqkv_ref[2], preferred_element_type=jnp.float32) + bv

    qh = q.reshape(seq, num_heads, head_dim)    # (S, NH, dh)
    kh = k.reshape(seq, num_heads, head_dim)
    vh = v.reshape(seq, num_heads, head_dim)

    scores = jnp.einsum('qhd,khd->hqk', qh, kh,
                        preferred_element_type=jnp.float32)          # (NH, S, S)
    scores = scores + mask                       # broadcast over heads & queries
    scores = scores - jnp.max(scores, axis=-1, keepdims=True)
    p = jnp.exp(scores)
    p = p * pl.reciprocal(jnp.sum(p, axis=-1, keepdims=True), approx=True)
    ctx = jnp.einsum('hqk,khd->qhd', p, vh,
                     preferred_element_type=jnp.float32)             # (S, NH, dh)
    ctx = ctx.reshape(seq, hidden)                                   # (S, H)

    attn_out = jnp.dot(ctx.astype(jnp.bfloat16), wo_ref[...],
                       preferred_element_type=jnp.float32) + bo
    x = _layer_norm(x + attn_out, g1, be1)

    # ---------------- feed-forward ----------------
    h1 = jnp.dot(x.astype(jnp.bfloat16), w1_ref[...],
                 preferred_element_type=jnp.float32) + b1_ref[...]
    # TODO(synk): HF BertIntermediate default is exact erf-GELU; tanh approximation
    # (guaranteed Mosaic lowering) differs from it at the ~1e-3 level.
    h1 = 0.5 * h1 * (1.0 + jnp.tanh(0.7978845608028654 *
                                    (h1 + 0.044715 * h1 * h1 * h1)))
    ffn_out = jnp.dot(h1.astype(jnp.bfloat16), w2_ref[...],
                      preferred_element_type=jnp.float32) + b2
    x = _layer_norm(x + ffn_out, g2, be2)

    o_ref[...] = x.astype(o_ref.dtype)


# -------------------- wrapper --------------------
def bert_encoder(hidden_states, attention_mask, layer_params):
    """Mirrors BertEncoder.forward (return_dict=False, no cache/attn outputs)."""
    B, S, H = hidden_states.shape
    I = layer_params[0]["w1"].shape[1]
    L = len(layer_params)
    scale = 1.0 / math.sqrt(HEAD_DIM)

    # Extended additive mask (B, 1, S): 0 keep, finfo.min masked (HF fill value).
    neg = jnp.finfo(jnp.float32).min
    ext_mask = (1.0 - attention_mask.astype(jnp.float32))[:, None, :] * neg

    # ---- pack / stack per-layer params (done once, outside the kernel) ----
    # Fold attention scale into wq / bq; cast matmul weights to bf16.
    wqkv = jnp.stack([jnp.stack([p["wq"] * scale, p["wk"], p["wv"]])
                      for p in layer_params]).astype(jnp.bfloat16)   # (L,3,H,H)
    wo = jnp.stack([p["wo"] for p in layer_params]).astype(jnp.bfloat16)   # (L,H,H)
    w1 = jnp.stack([p["w1"] for p in layer_params]).astype(jnp.bfloat16)   # (L,H,I)
    w2 = jnp.stack([p["w2"] for p in layer_params]).astype(jnp.bfloat16)   # (L,I,H)
    b1 = jnp.stack([p["b1"] for p in layer_params])                        # (L,1,I) f32
    pvec = jnp.stack([jnp.concatenate(
        [p["bq"] * scale, p["bk"], p["bv"], p["bo"],
         p["ln1_g"], p["ln1_b"], p["b2"], p["ln2_g"], p["ln2_b"]], axis=0)
        for p in layer_params])                                            # (L,9,H) f32

    kernel = functools.partial(encoder_kernel, num_heads=NUM_HEADS,
                               head_dim=HEAD_DIM, seq=S, hidden=H)

    out = pl.pallas_call(
        kernel,
        out_shape=jax.ShapeDtypeStruct((B, S, H), hidden_states.dtype),
        grid_spec=pltpu.PrefetchScalarGridSpec(
            num_scalar_prefetch=0,
            grid=(B, L),   # batch parallel; layer axis innermost / carried
            in_specs=[
                pl.BlockSpec((None, S, H), lambda b, l: (b, 0, 0)),        # x
                pl.BlockSpec((None, 1, S), lambda b, l: (b, 0, 0)),        # mask
                pl.BlockSpec((None, 3, H, H), lambda b, l: (l, 0, 0, 0)),  # wq|wk|wv
                pl.BlockSpec((None, H, H), lambda b, l: (l, 0, 0)),        # wo
                pl.BlockSpec((None, H, I), lambda b, l: (l, 0, 0)),        # w1
                pl.BlockSpec((None, 1, I), lambda b, l: (l, 0, 0)),        # b1
                pl.BlockSpec((None, I, H), lambda b, l: (l, 0, 0)),        # w2
                pl.BlockSpec((None, 9, H), lambda b, l: (l, 0, 0)),        # packed vecs
            ],
            out_specs=pl.BlockSpec((None, S, H), lambda b, l: (b, 0, 0)),
        ),
        input_output_aliases={0: 0},
        compiler_params=pltpu.CompilerParams(
            dimension_semantics=("parallel", "arbitrary")),
    )(hidden_states, ext_mask, wqkv, wo, w1, b1, w2, pvec)

    return out


# -------------------- deterministic parameter init --------------------
def init_layer_params(key):
    keys = jax.random.split(key, 8)
    s = 0.02
    H, I = HIDDEN, INTERMEDIATE
    return {
        "wq": s * jax.random.normal(keys[0], (H, H), jnp.float32),
        "bq": jnp.zeros((1, H), jnp.float32),
        "wk": s * jax.random.normal(keys[1], (H, H), jnp.float32),
        "bk": jnp.zeros((1, H), jnp.float32),
        "wv": s * jax.random.normal(keys[2], (H, H), jnp.float32),
        "bv": jnp.zeros((1, H), jnp.float32),
        "wo": s * jax.random.normal(keys[3], (H, H), jnp.float32),
        "bo": jnp.zeros((1, H), jnp.float32),
        "ln1_g": jnp.ones((1, H), jnp.float32),
        "ln1_b": jnp.zeros((1, H), jnp.float32),
        "w1": s * jax.random.normal(keys[4], (H, I), jnp.float32),
        "b1": jnp.zeros((1, I), jnp.float32),
        "w2": s * jax.random.normal(keys[5], (I, H), jnp.float32),
        "b2": jnp.zeros((1, H), jnp.float32),
        "ln2_g": jnp.ones((1, H), jnp.float32),
        "ln2_b": jnp.zeros((1, H), jnp.float32),
    }


if __name__ == "__main__":
    root = jax.random.PRNGKey(0)
    k_x, k_layers = jax.random.split(root)

    hidden_states = jax.random.normal(k_x, (BATCH, SEQ, HIDDEN), jnp.float32)
    attention_mask = jnp.ones((BATCH, SEQ), jnp.float32)
    attention_mask = attention_mask.at[1, -2:].set(0.0)  # mask last 2 tokens of batch 1

    layer_keys = jax.random.split(k_layers, NUM_LAYERS)
    layer_params = [init_layer_params(k) for k in layer_keys]

    out = bert_encoder(hidden_states, attention_mask, layer_params)
    out = jax.block_until_ready(out)

    assert out.shape == (BATCH, SEQ, HIDDEN)
    assert bool(jnp.all(jnp.isfinite(out)))
    print("KERNEL_OK")
</pallas_src>

<mosaic_0001>
module attributes {stable_mosaic.version = 11 : i64} {
  func.func @encoder_kernel(%arg0: i32, %arg1: i32, %arg2: memref<1x8x32xf32, #tpu.memory_space<vmem>>, %arg3: memref<1x1x8xf32, #tpu.memory_space<vmem>>, %arg4: memref<1x3x32x32xbf16, #tpu.memory_space<vmem>>, %arg5: memref<1x32x32xbf16, #tpu.memory_space<vmem>>, %arg6: memref<1x32x64xbf16, #tpu.memory_space<vmem>>, %arg7: memref<1x1x64xf32, #tpu.memory_space<vmem>>, %arg8: memref<1x64x32xbf16, #tpu.memory_space<vmem>>, %arg9: memref<1x9x32xf32, #tpu.memory_space<vmem>>, %arg10: memref<1x8x32xf32, #tpu.memory_space<vmem>>) attributes {dimension_semantics = [#tpu.dimension_semantics<parallel>, #tpu.dimension_semantics<arbitrary>], iteration_bounds = array<i64: 2, 2>, scalar_prefetch = 0 : i64, scratch_operands = 0 : i64, tpu.core_type = #tpu.core_type<tc>, window_params = [{transform_indices = @transform_0, window_bounds = array<i64: 1, 8, 32>}, {transform_indices = @transform_1, window_bounds = array<i64: 1, 1, 8>}, {transform_indices = @transform_2, window_bounds = array<i64: 1, 3, 32, 32>}, {transform_indices = @transform_3, window_bounds = array<i64: 1, 32, 32>}, {transform_indices = @transform_4, window_bounds = array<i64: 1, 32, 64>}, {transform_indices = @transform_5, window_bounds = array<i64: 1, 1, 64>}, {transform_indices = @transform_6, window_bounds = array<i64: 1, 64, 32>}, {transform_indices = @transform_7, window_bounds = array<i64: 1, 9, 32>}, {transform_indices = @transform_8, window_bounds = array<i64: 1, 8, 32>}]} {
    %c0_i32 = arith.constant 0 : i32
    %0 = arith.cmpi eq, %arg1, %c0_i32 : i32
    %1 = arith.extui %0 : i1 to i32
    %c0_i32_0 = arith.constant 0 : i32
    %2 = arith.cmpi ne, %1, %c0_i32_0 : i32
    scf.if %2 {
      %c0_57 = arith.constant 0 : index
      %c0_58 = arith.constant 0 : index
      %c0_59 = arith.constant 0 : index
      %136 = vector.load %arg2[%c0_57, %c0_58, %c0_59] : memref<1x8x32xf32, #tpu.memory_space<vmem>>, vector<1x8x32xf32>
      %137 = vector.shape_cast %136 : vector<1x8x32xf32> to vector<8x32xf32>
      %c0_60 = arith.constant 0 : index
      %c0_61 = arith.constant 0 : index
      %c0_62 = arith.constant 0 : index
      %138 = vector.load %arg10[%c0_60, %c0_61, %c0_62] : memref<1x8x32xf32, #tpu.memory_space<vmem>>, vector<1x8x32xf32>
      %139 = vector.shape_cast %138 : vector<1x8x32xf32> to vector<8x32xf32>
      %140 = vector.shape_cast %137 : vector<8x32xf32> to vector<1x8x32xf32>
      tpu.vector_store %arg10[%c0_60, %c0_61, %c0_62], %140 {strides = array<i32>} : memref<1x8x32xf32, #tpu.memory_space<vmem>>, vector<1x8x32xf32>,
    } else {
    }
    %c0 = arith.constant 0 : index
    %c0_1 = arith.constant 0 : index
    %c0_2 = arith.constant 0 : index
    %3 = vector.load %arg10[%c0, %c0_1, %c0_2] : memref<1x8x32xf32, #tpu.memory_space<vmem>>, vector<1x8x32xf32>
    %4 = vector.shape_cast %3 : vector<1x8x32xf32> to vector<8x32xf32>
    %c0_3 = arith.constant 0 : index
    %c0_4 = arith.constant 0 : index
    %c0_5 = arith.constant 0 : index
    %5 = vector.load %arg3[%c0_3, %c0_4, %c0_5] : memref<1x1x8xf32, #tpu.memory_space<vmem>>, vector<1x1x8xf32>
    %6 = vector.shape_cast %5 : vector<1x1x8xf32> to vector<1x8xf32>
    %c0_6 = arith.constant 0 : index
    %c0_7 = arith.constant 0 : index
    %c0_8 = arith.constant 0 : index
    %7 = vector.load %arg9[%c0_6, %c0_7, %c0_8] : memref<1x9x32xf32, #tpu.memory_space<vmem>>, vector<1x9x32xf32>
    %8 = vector.shape_cast %7 : vector<1x9x32xf32> to vector<9x32xf32>
    %9 = vector.extract_strided_slice %8 {offsets = [0, 0], sizes = [1, 32], strides = [1, 1]} : vector<9x32xf32> to vector<1x32xf32>
    %10 = vector.extract_strided_slice %8 {offsets = [1, 0], sizes = [1, 32], strides = [1, 1]} : vector<9x32xf32> to vector<1x32xf32>
    %11 = vector.extract_strided_slice %8 {offsets = [2, 0], sizes = [1, 32], strides = [1, 1]} : vector<9x32xf32> to vector<1x32xf32>
    %12 = vector.extract_strided_slice %8 {offsets = [3, 0], sizes = [1, 32], strides = [1, 1]} : vector<9x32xf32> to vector<1x32xf32>
    %13 = vector.extract_strided_slice %8 {offsets = [4, 0], sizes = [1, 32], strides = [1, 1]} : vector<9x32xf32> to vector<1x32xf32>
    %14 = vector.extract_strided_slice %8 {offsets = [5, 0], sizes = [1, 32], strides = [1, 1]} : vector<9x32xf32> to vector<1x32xf32>
    %15 = vector.extract_strided_slice %8 {offsets = [6, 0], sizes = [1, 32], strides = [1, 1]} : vector<9x32xf32> to vector<1x32xf32>
    %16 = vector.extract_strided_slice %8 {offsets = [7, 0], sizes = [1, 32], strides = [1, 1]} : vector<9x32xf32> to vector<1x32xf32>
    %17 = vector.extract_strided_slice %8 {offsets = [8, 0], sizes = [1, 32], strides = [1, 1]} : vector<9x32xf32> to vector<1x32xf32>
    %18 = arith.truncf %4 : vector<8x32xf32> to vector<8x32xbf16>
    %c0_9 = arith.constant 0 : index
    %c0_10 = arith.constant 0 : index
    %c0_11 = arith.constant 0 : index
    %c0_12 = arith.constant 0 : index
    %19 = vector.load %arg4[%c0_9, %c0_10, %c0_11, %c0_12] : memref<1x3x32x32xbf16, #tpu.memory_space<vmem>>, vector<1x1x32x32xbf16>
    %20 = vector.shape_cast %19 : vector<1x1x32x32xbf16> to vector<32x32xbf16>
    %cst = arith.constant dense<0.000000e+00> : vector<8x32xf32>
    %21 = tpu.matmul %18, %20, %cst {dimension_numbers = #tpu.dot_dimension_numbers<[1], [0], [0], [1], [0, 0, 1, 1], [], []>} : vector<8x32xbf16>, vector<32x32xbf16>, vector<8x32xf32> -> vector<8x32xf32>
    %22 = vector.broadcast %9 : vector<1x32xf32> to vector<8x32xf32>
    %23 = arith.addf %21, %22 : vector<8x32xf32>
    %c0_13 = arith.constant 0 : index
    %c1 = arith.constant 1 : index
    %c0_14 = arith.constant 0 : index
    %c0_15 = arith.constant 0 : index
    %24 = vector.load %arg4[%c0_13, %c1, %c0_14, %c0_15] : memref<1x3x32x32xbf16, #tpu.memory_space<vmem>>, vector<1x1x32x32xbf16>
    %25 = vector.shape_cast %24 : vector<1x1x32x32xbf16> to vector<32x32xbf16>
    %cst_16 = arith.constant dense<0.000000e+00> : vector<8x32xf32>
    %26 = tpu.matmul %18, %25, %cst_16 {dimension_numbers = #tpu.dot_dimension_numbers<[1], [0], [0], [1], [0, 0, 1, 1], [], []>} : vector<8x32xbf16>, vector<32x32xbf16>, vector<8x32xf32> -> vector<8x32xf32>
    %27 = vector.broadcast %10 : vector<1x32xf32> to vector<8x32xf32>
    %28 = arith.addf %26, %27 : vector<8x32xf32>
    %c0_17 = arith.constant 0 : index
    %c2 = arith.constant 2 : index
    %c0_18 = arith.constant 0 : index
    %c0_19 = arith.constant 0 : index
    %29 = vector.load %arg4[%c0_17, %c2, %c0_18, %c0_19] : memref<1x3x32x32xbf16, #tpu.memory_space<vmem>>, vector<1x1x32x32xbf16>
    %30 = vector.shape_cast %29 : vector<1x1x32x32xbf16> to vector<32x32xbf16>
    %cst_20 = arith.constant dense<0.000000e+00> : vector<8x32xf32>
    %31 = tpu.matmul %18, %30, %cst_20 {dimension_numbers = #tpu.dot_dimension_numbers<[1], [0], [0], [1], [0, 0, 1, 1], [], []>} : vector<8x32xbf16>, vector<32x32xbf16>, vector<8x32xf32> -> vector<8x32xf32>
    %32 = vector.broadcast %11 : vector<1x32xf32> to vector<8x32xf32>
    %33 = arith.addf %31, %32 : vector<8x32xf32>
    %34 = vector.shape_cast %23 : vector<8x32xf32> to vector<8x4x8xf32>
    %35 = vector.shape_cast %28 : vector<8x32xf32> to vector<8x4x8xf32>
    %36 = vector.shape_cast %33 : vector<8x32xf32> to vector<8x4x8xf32>
    "tpu.trace_start"() <{level = 10 : i32, message = "qhd,khd->hqk"}> : () -> ()
    %cst_21 = arith.constant dense<0.000000e+00> : vector<4x8x8xf32>
    %37 = tpu.matmul %34, %35, %cst_21 {dimension_numbers = #tpu.dot_dimension_numbers<[2], [2], [0], [0], [0, 1, 0, 0, 1, 0], [1], [1]>} : vector<8x4x8xf32>, vector<8x4x8xf32>, vector<4x8x8xf32> -> vector<4x8x8xf32>
    "tpu.trace_stop"() : () -> ()
    %38 = vector.shape_cast %6 : vector<1x8xf32> to vector<1x1x8xf32>
    %39 = vector.broadcast %38 : vector<1x1x8xf32> to vector<4x8x8xf32>
    %40 = arith.addf %37, %39 : vector<4x8x8xf32>
    %cst_22 = arith.constant dense<0xFF800000> : vector<4x8xf32>
    %41 = vector.multi_reduction <maximumf>, %40, %cst_22 [2] : vector<4x8x8xf32> to vector<4x8xf32>
    %42 = vector.shape_cast %41 : vector<4x8xf32> to vector<4x8x1xf32>
    %43 = vector.broadcast %42 : vector<4x8x1xf32> to vector<4x8x8xf32>
    %44 = arith.subf %40, %43 : vector<4x8x8xf32>
    %45 = math.exp %44 : vector<4x8x8xf32>
    %cst_23 = arith.constant dense<0.000000e+00> : vector<4x8xf32>
    %46 = vector.multi_reduction <add>, %45, %cst_23 [2] : vector<4x8x8xf32> to vector<4x8xf32>
    %47 = vector.shape_cast %46 : vector<4x8xf32> to vector<4x8x1xf32>
    %48 = tpu.reciprocal %47 {approx = true} : vector<4x8x1xf32> -> vector<4x8x1xf32>
    %49 = vector.broadcast %48 : vector<4x8x1xf32> to vector<4x8x8xf32>
    %50 = arith.mulf %45, %49 : vector<4x8x8xf32>
    "tpu.trace_start"() <{level = 10 : i32, message = "hqk,khd->qhd"}> : () -> ()
    %cst_24 = arith.constant dense<0.000000e+00> : vector<4x8x8xf32>
    %51 = tpu.matmul %36, %50, %cst_24 {dimension_numbers = #tpu.dot_dimension_numbers<[0], [2], [2], [1], [0, 1, 0, 2, 1, 1], [1], [0]>} : vector<8x4x8xf32>, vector<4x8x8xf32>, vector<4x8x8xf32> -> vector<4x8x8xf32>
    %52 = tpu.transpose %51, [2, 0, 1] : vector<4x8x8xf32> -> vector<8x4x8xf32>
    "tpu.trace_stop"() : () -> ()
    %53 = vector.shape_cast %52 : vector<8x4x8xf32> to vector<8x32xf32>
    %54 = arith.truncf %53 : vector<8x32xf32> to vector<8x32xbf16>
    %c0_25 = arith.constant 0 : index
    %c0_26 = arith.constant 0 : index
    %c0_27 = arith.constant 0 : index
    %55 = vector.load %arg5[%c0_25, %c0_26, %c0_27] : memref<1x32x32xbf16, #tpu.memory_space<vmem>>, vector<1x32x32xbf16>
    %56 = vector.shape_cast %55 : vector<1x32x32xbf16> to vector<32x32xbf16>
    %cst_28 = arith.constant dense<0.000000e+00> : vector<8x32xf32>
    %57 = tpu.matmul %54, %56, %cst_28 {dimension_numbers = #tpu.dot_dimension_numbers<[1], [0], [0], [1], [0, 0, 1, 1], [], []>} : vector<8x32xbf16>, vector<32x32xbf16>, vector<8x32xf32> -> vector<8x32xf32>
    %58 = vector.broadcast %12 : vector<1x32xf32> to vector<8x32xf32>
    %59 = arith.addf %57, %58 : vector<8x32xf32>
    %60 = arith.addf %4, %59 : vector<8x32xf32>
    %cst_29 = arith.constant dense<0.000000e+00> : vector<8xf32>
    %61 = vector.multi_reduction <add>, %60, %cst_29 [1] : vector<8x32xf32> to vector<8xf32>
    %62 = vector.shape_cast %61 : vector<8xf32> to vector<8x1xf32>
    %cst_30 = arith.constant 3.200000e+01 : f32
    %63 = vector.broadcast %cst_30 : f32 to vector<8x1xf32>
    %64 = arith.divf %62, %63 : vector<8x1xf32>
    %65 = arith.mulf %60, %60 : vector<8x32xf32>
    %cst_31 = arith.constant dense<0.000000e+00> : vector<8xf32>
    %66 = vector.multi_reduction <add>, %65, %cst_31 [1] : vector<8x32xf32> to vector<8xf32>
    %67 = vector.shape_cast %66 : vector<8xf32> to vector<8x1xf32>
    %cst_32 = arith.constant 3.200000e+01 : f32
    %68 = vector.broadcast %cst_32 : f32 to vector<8x1xf32>
    %69 = arith.divf %67, %68 : vector<8x1xf32>
    %70 = arith.mulf %64, %64 : vector<8x1xf32>
    %71 = arith.subf %69, %70 : vector<8x1xf32>
    %72 = vector.broadcast %64 : vector<8x1xf32> to vector<8x32xf32>
    %73 = arith.subf %60, %72 : vector<8x32xf32>
    %cst_33 = arith.constant 9.99999996E-13 : f32
    %74 = vector.broadcast %cst_33 : f32 to vector<8x1xf32>
    %75 = arith.addf %71, %74 : vector<8x1xf32>
    %76 = math.rsqrt %75 : vector<8x1xf32>
    %77 = vector.broadcast %76 : vector<8x1xf32> to vector<8x32xf32>
    %78 = arith.mulf %73, %77 : vector<8x32xf32>
    %79 = vector.broadcast %13 : vector<1x32xf32> to vector<8x32xf32>
    %80 = arith.mulf %78, %79 : vector<8x32xf32>
    %81 = vector.broadcast %14 : vector<1x32xf32> to vector<8x32xf32>
    %82 = arith.addf %80, %81 : vector<8x32xf32>
    %83 = arith.truncf %82 : vector<8x32xf32> to vector<8x32xbf16>
    %c0_34 = arith.constant 0 : index
    %c0_35 = arith.constant 0 : index
    %c0_36 = arith.constant 0 : index
    %84 = vector.load %arg6[%c0_34, %c0_35, %c0_36] : memref<1x32x64xbf16, #tpu.memory_space<vmem>>, vector<1x32x64xbf16>
    %85 = vector.shape_cast %84 : vector<1x32x64xbf16> to vector<32x64xbf16>
    %cst_37 = arith.constant dense<0.000000e+00> : vector<8x64xf32>
    %86 = tpu.matmul %83, %85, %cst_37 {dimension_numbers = #tpu.dot_dimension_numbers<[1], [0], [0], [1], [0, 0, 1, 1], [], []>} : vector<8x32xbf16>, vector<32x64xbf16>, vector<8x64xf32> -> vector<8x64xf32>
    %c0_38 = arith.constant 0 : index
    %c0_39 = arith.constant 0 : index
    %c0_40 = arith.constant 0 : index
    %87 = vector.load %arg7[%c0_38, %c0_39, %c0_40] : memref<1x1x64xf32, #tpu.memory_space<vmem>>, vector<1x1x64xf32>
    %88 = vector.shape_cast %87 : vector<1x1x64xf32> to vector<1x64xf32>
    %89 = vector.broadcast %88 : vector<1x64xf32> to vector<8x64xf32>
    %90 = arith.addf %86, %89 : vector<8x64xf32>
    %cst_41 = arith.constant 5.000000e-01 : f32
    %91 = vector.broadcast %cst_41 : f32 to vector<8x64xf32>
    %92 = arith.mulf %91, %90 : vector<8x64xf32>
    %cst_42 = arith.constant 4.471500e-02 : f32
    %93 = vector.broadcast %cst_42 : f32 to vector<8x64xf32>
    %94 = arith.mulf %93, %90 : vector<8x64xf32>
    %95 = arith.mulf %94, %90 : vector<8x64xf32>
    %96 = arith.mulf %95, %90 : vector<8x64xf32>
    %97 = arith.addf %90, %96 : vector<8x64xf32>
    %cst_43 = arith.constant 0.797884583 : f32
    %98 = vector.broadcast %cst_43 : f32 to vector<8x64xf32>
    %99 = arith.mulf %98, %97 : vector<8x64xf32>
    %100 = math.tanh %99 : vector<8x64xf32>
    %cst_44 = arith.constant 1.000000e+00 : f32
    %101 = vector.broadcast %cst_44 : f32 to vector<8x64xf32>
    %102 = arith.addf %101, %100 : vector<8x64xf32>
    %103 = arith.mulf %92, %102 : vector<8x64xf32>
    %104 = arith.truncf %103 : vector<8x64xf32> to vector<8x64xbf16>
    %c0_45 = arith.constant 0 : index
    %c0_46 = arith.constant 0 : index
    %c0_47 = arith.constant 0 : index
    %105 = vector.load %arg8[%c0_45, %c0_46, %c0_47] : memref<1x64x32xbf16, #tpu.memory_space<vmem>>, vector<1x64x32xbf16>
    %106 = vector.shape_cast %105 : vector<1x64x32xbf16> to vector<64x32xbf16>
    %cst_48 = arith.constant dense<0.000000e+00> : vector<8x32xf32>
    %107 = tpu.matmul %104, %106, %cst_48 {dimension_numbers = #tpu.dot_dimension_numbers<[1], [0], [0], [1], [0, 0, 1, 1], [], []>} : vector<8x64xbf16>, vector<64x32xbf16>, vector<8x32xf32> -> vector<8x32xf32>
    %108 = vector.broadcast %15 : vector<1x32xf32> to vector<8x32xf32>
    %109 = arith.addf %107, %108 : vector<8x32xf32>
    %110 = arith.addf %82, %109 : vector<8x32xf32>
    %cst_49 = arith.constant dense<0.000000e+00> : vector<8xf32>
    %111 = vector.multi_reduction <add>, %110, %cst_49 [1] : vector<8x32xf32> to vector<8xf32>
    %112 = vector.shape_cast %111 : vector<8xf32> to vector<8x1xf32>
    %cst_50 = arith.constant 3.200000e+01 : f32
    %113 = vector.broadcast %cst_50 : f32 to vector<8x1xf32>
    %114 = arith.divf %112, %113 : vector<8x1xf32>
    %115 = arith.mulf %110, %110 : vector<8x32xf32>
    %cst_51 = arith.constant dense<0.000000e+00> : vector<8xf32>
    %116 = vector.multi_reduction <add>, %115, %cst_51 [1] : vector<8x32xf32> to vector<8xf32>
    %117 = vector.shape_cast %116 : vector<8xf32> to vector<8x1xf32>
    %cst_52 = arith.constant 3.200000e+01 : f32
    %118 = vector.broadcast %cst_52 : f32 to vector<8x1xf32>
    %119 = arith.divf %117, %118 : vector<8x1xf32>
    %120 = arith.mulf %114, %114 : vector<8x1xf32>
    %121 = arith.subf %119, %120 : vector<8x1xf32>
    %122 = vector.broadcast %114 : vector<8x1xf32> to vector<8x32xf32>
    %123 = arith.subf %110, %122 : vector<8x32xf32>
    %cst_53 = arith.constant 9.99999996E-13 : f32
    %124 = vector.broadcast %cst_53 : f32 to vector<8x1xf32>
    %125 = arith.addf %121, %124 : vector<8x1xf32>
    %126 = math.rsqrt %125 : vector<8x1xf32>
    %127 = vector.broadcast %126 : vector<8x1xf32> to vector<8x32xf32>
    %128 = arith.mulf %123, %127 : vector<8x32xf32>
    %129 = vector.broadcast %16 : vector<1x32xf32> to vector<8x32xf32>
    %130 = arith.mulf %128, %129 : vector<8x32xf32>
    %131 = vector.broadcast %17 : vector<1x32xf32> to vector<8x32xf32>
    %132 = arith.addf %130, %131 : vector<8x32xf32>
    %c0_54 = arith.constant 0 : index
    %c0_55 = arith.constant 0 : index
    %c0_56 = arith.constant 0 : index
    %133 = vector.load %arg10[%c0_54, %c0_55, %c0_56] : memref<1x8x32xf32, #tpu.memory_space<vmem>>, vector<1x8x32xf32>
    %134 = vector.shape_cast %133 : vector<1x8x32xf32> to vector<8x32xf32>
    %135 = vector.shape_cast %132 : vector<8x32xf32> to vector<1x8x32xf32>
    tpu.vector_store %arg10[%c0_54, %c0_55, %c0_56], %135 {strides = array<i32>} : memref<1x8x32xf32, #tpu.memory_space<vmem>>, vector<1x8x32xf32>,
    return
  }
  func.func @transform_0(%arg0: i32, %arg1: i32) -> (i32, i32, i32) {
    %c0_i32 = arith.constant 0 : i32
    %c0_i32_0 = arith.constant 0 : i32
    %c0_i32_1 = arith.constant 0 : i32
    return %arg0, %c0_i32, %c0_i32_0 : i32, i32, i32
  }
  func.func @transform_1(%arg0: i32, %arg1: i32) -> (i32, i32, i32) {
    %c0_i32 = arith.constant 0 : i32
    %c0_i32_0 = arith.constant 0 : i32
    %c0_i32_1 = arith.constant 0 : i32
    return %arg0, %c0_i32, %c0_i32_0 : i32, i32, i32
  }
  func.func @transform_2(%arg0: i32, %arg1: i32) -> (i32, i32, i32, i32) {
    %c0_i32 = arith.constant 0 : i32
    %c0_i32_0 = arith.constant 0 : i32
    %c0_i32_1 = arith.constant 0 : i32
    %c0_i32_2 = arith.constant 0 : i32
    return %arg1, %c0_i32, %c0_i32_0, %c0_i32_1 : i32, i32, i32, i32
  }
  func.func @transform_3(%arg0: i32, %arg1: i32) -> (i32, i32, i32) {
    %c0_i32 = arith.constant 0 : i32
    %c0_i32_0 = arith.constant 0 : i32
    %c0_i32_1 = arith.constant 0 : i32
    return %arg1, %c0_i32, %c0_i32_0 : i32, i32, i32
  }
  func.func @transform_4(%arg0: i32, %arg1: i32) -> (i32, i32, i32) {
    %c0_i32 = arith.constant 0 : i32
    %c0_i32_0 = arith.constant 0 : i32
    %c0_i32_1 = arith.constant 0 : i32
    return %arg1, %c0_i32, %c0_i32_0 : i32, i32, i32
  }
  func.func @transform_5(%arg0: i32, %arg1: i32) -> (i32, i32, i32) {
    %c0_i32 = arith.constant 0 : i32
    %c0_i32_0 = arith.constant 0 : i32
    %c0_i32_1 = arith.constant 0 : i32
    return %arg1, %c0_i32, %c0_i32_0 : i32, i32, i32
  }
  func.func @transform_6(%arg0: i32, %arg1: i32) -> (i32, i32, i32) {
    %c0_i32 = arith.constant 0 : i32
    %c0_i32_0 = arith.constant 0 : i32
    %c0_i32_1 = arith.constant 0 : i32
    return %arg1, %c0_i32, %c0_i32_0 : i32, i32, i32
  }
  func.func @transform_7(%arg0: i32, %arg1: i32) -> (i32, i32, i32) {
    %c0_i32 = arith.constant 0 : i32
    %c0_i32_0 = arith.constant 0 : i32
    %c0_i32_1 = arith.constant 0 : i32
    return %arg1, %c0_i32, %c0_i32_0 : i32, i32, i32
  }
  func.func @transform_8(%arg0: i32, %arg1: i32) -> (i32, i32, i32) {
    %c0_i32 = arith.constant 0 : i32
    %c0_i32_0 = arith.constant 0 : i32
    %c0_i32_1 = arith.constant 0 : i32
    return %arg0, %c0_i32, %c0_i32_0 : i32, i32, i32
  }
}

</mosaic_0001>

<llo_original>
// kernel: tpu_custom_call.1
$region0: #{tpu_custom_call.1}
  #allocation0 [shape = 'u32[]', space=smem, size = 0x4, offset = 0x4, fixed_abs, tag = 'smem constant byte address 0x4 - core index']
  #allocation1 [shape = 'u32[144,128]{1,0:T(1,128)}', space=vmem, size = 0x12000, scoped, tag = 'internal scratch']
  %s0 = inlined_call_operand.hbm [shape: f32[2,8,32], index: 0, kind: input, shape index: {}, may-alias: {0,8}]
  %s1 = inlined_call_operand.hbm [shape: f32[2,1,8], index: 1, kind: input, shape index: {}]
  %s2 = inlined_call_operand.vmem [shape: bf16[2,3,32,32], index: 2, kind: input, shape index: {}]
  %s3 = inlined_call_operand.vmem [shape: bf16[2,32,32], index: 3, kind: input, shape index: {}]
  %s4 = inlined_call_operand.vmem [shape: bf16[2,32,64], index: 4, kind: input, shape index: {}]
  %s5 = inlined_call_operand.vmem [shape: f32[2,1,64], index: 5, kind: input, shape index: {}]
  %s6 = inlined_call_operand.vmem [shape: bf16[2,64,32], index: 6, kind: input, shape index: {}]
  %s7 = inlined_call_operand.vmem [shape: f32[2,9,32], index: 7, kind: input, shape index: {}]
  %s8 = inlined_call_operand.hbm [shape: f32[2,8,32], index: 8, kind: output, shape index: {}, may-alias: {0,8}]
  %s9 = sld [smem:[#allocation0]]
  $region77: #{tpu_custom_call.1} parent=0
    _
  %s11 = ssub.s32 1, %s9
  %s12 = scalar_select 0, %s11, %s9
  $region1: #{tpu_custom_call.1} parent=0
    #allocation2 [shape = 'u8[8192]{0}', space=vmem, size = 0x2000, scoped, tag = 'input window, operand 0']
    #allocation3 [shape = 's32[2]{0}', space=sflag, size = 0x8, scoped, tag = 'scoped memory for tpu_custom_call.1']
    #allocation4 [shape = 's32[2]{0}', space=sflag, size = 0x8, scoped, tag = 'scoped memory for tpu_custom_call.1']
    #allocation5 [shape = 'u8[1024]{0}', space=vmem, size = 0x400, scoped, tag = 'input window, operand 1']
    #allocation6 [shape = 's32[2]{0}', space=sflag, size = 0x8, scoped, tag = 'scoped memory for tpu_custom_call.1']
    #allocation7 [shape = 'u8[8192]{0}', space=vmem, size = 0x2000, scoped, tag = 'output window, operand 0']
    %13 = vsyncpa [#allocation3], 0
    %s14 = scalar_lea.sflag [#allocation3], 1
    %15 = vsyncpa %s14, 0
    %16 = vsyncpa [#allocation6], 0
    %s17 = scalar_lea.sflag [#allocation6], 1
    %18 = vsyncpa %s17, 0
    %19 = vsyncpa [#allocation4], 0
    %s20 = scalar_lea.sflag [#allocation4], 1
    %21 = vsyncpa %s20, 0
    loop: start=0, step=1, limit=6
    $region2: #{tpu_custom_call.1} parent=1 // loop_pre_header
      _
    $region3: #{tpu_custom_call.1} parent=1 // loop_header
      %s23 = sphi 0, %s27
      %p24 = scmp.ge.s32.totalorder %s23, 6
      %s30 = sphi 0, %s42
      %s31 = sphi 0, %s38
      %s32 = sphi 0, %s30
      %s33 = sphi 0, %s31
      %s34 = sphi 0, %s32
      %s35 = sphi 0, %s33
      %s45 = sphi 0, %s47
      %s48 = sphi 0, %s45
      %s49 = sphi 0, %s48
      %s65 = sphi 0, %s49
      %s71 = sphi 0, %s73
      %s74 = sphi 0, %s71
      %s75 = sphi 0, %s74
      %s91 = sphi 0, %s75
      %s97 = sphi 0, %s99
      %s100 = sphi 0, %s97
      %s101 = sphi 0, %s100
      %s117 = sphi 0, %s101
      %s123 = sphi 0, %s125
      %s126 = sphi 0, %s123
      %s127 = sphi 0, %s126
      %s143 = sphi 0, %s127
      %s149 = sphi 0, %s151
      %s152 = sphi 0, %s149
      %s153 = sphi 0, %s152
      %s169 = sphi 0, %s153
      %s175 = sphi 0, %s177
      %s178 = sphi 0, %s175
      %s179 = sphi 0, %s178
      %s195 = sphi 0, %s179
      %s201 = sphi 0, %s203
      %s204 = sphi 0, %s201
      %s205 = sphi 0, %s204
      %s221 = sphi 0, %s205
      %s227 = sphi 0, %s229
      %s230 = sphi 0, %s227
      %s231 = sphi 0, %s230
      %s247 = sphi 0, %s231
      %s253 = sphi 0, %s255
      %s256 = sphi 0, %s253
      %s257 = sphi 0, %s256
      %s273 = sphi 0, %s257
    $region4: #{tpu_custom_call.1} parent=1 // loop_header_branch
      %26 = sbr.rel (%p24) target = $region8
    $region5: #{tpu_custom_call.1} parent=1 // loop_body
      %s28 = ssub.s32 %s23, 1
      %s29 = ssub.s32 %s23, 2
      %s36 = sadd.s32 1, %s31
      %p37 = scmp.ge.s32.totalorder %s36, 2
      %s38 = scalar_select %p37, 0, %s36
      %s39 = sadd.s32 1, %s30
      %s40 = scalar_select %p37, %s39, %s30
      %p41 = scmp.ge.s32.totalorder %s40, 2
      %s42 = scalar_select %p41, 0, %s40
      %s43 = ssub.s32 %s30, %s42
      %p44 = scmp.eq.s32.totalorder %s43, 0
      %s46 = sadd.s32 %s45, 1
      %s47 = scalar_select %p44, %s45, %s46
      %p50 = pneg %p44
      %p51 = scmp.eq.s32.totalorder %s23, 3
      %p52 = por %p50, %p51
      %p53 = scmp.ne.s32.totalorder %s45, %s48
      %p54 = scmp.eq.s32.totalorder %s23, 0
      %p55 = por %p53, %p54
      %p56 = scmp.ne.s32.totalorder %s45, %s48
      %p57 = scmp.eq.s32.totalorder %s28, 3
      %p58 = por %p56, %p57
      %p59 = scmp.ne.s32.totalorder %s48, %s49
      %p60 = scmp.eq.s32.totalorder %s28, 0
      %p61 = por %p59, %p60
      %p62 = scmp.ne.s32.totalorder %s48, %s49
      %p63 = scmp.eq.s32.totalorder %s29, 3
      %p64 = por %p62, %p63
      %p66 = scmp.ne.s32.totalorder %s49, %s65
      %p67 = scmp.eq.s32.totalorder %s29, 0
      %p68 = por %p66, %p67
      %s69 = ssub.s32 %s30, %s42
      %p70 = scmp.eq.s32.totalorder %s69, 0
      %s72 = sadd.s32 %s71, 1
      %s73 = scalar_select %p70, %s71, %s72
      %p76 = pneg %p70
      %p77 = scmp.eq.s32.totalorder %s23, 3
      %p78 = por %p76, %p77
      %p79 = scmp.ne.s32.totalorder %s71, %s74
      %p80 = scmp.eq.s32.totalorder %s23, 0
      %p81 = por %p79, %p80
      %p82 = scmp.ne.s32.totalorder %s71, %s74
      %p83 = scmp.eq.s32.totalorder %s28, 3
      %p84 = por %p82, %p83
      %p85 = scmp.ne.s32.totalorder %s74, %s75
      %p86 = scmp.eq.s32.totalorder %s28, 0
      %p87 = por %p85, %p86
      %p88 = scmp.ne.s32.totalorder %s74, %s75
      %p89 = scmp.eq.s32.totalorder %s29, 3
      %p90 = por %p88, %p89
      %p92 = scmp.ne.s32.totalorder %s75, %s91
      %p93 = scmp.eq.s32.totalorder %s29, 0
      %p94 = por %p92, %p93
      %s95 = ssub.s32 %s31, %s38
      %p96 = scmp.eq.s32.totalorder %s95, 0
      %s98 = sadd.s32 %s97, 1
      %s99 = scalar_select %p96, %s97, %s98
      %p102 = pneg %p96
      %p103 = scmp.eq.s32.totalorder %s23, 3
      %p104 = por %p102, %p103
      %p105 = scmp.ne.s32.totalorder %s97, %s100
      %p106 = scmp.eq.s32.totalorder %s23, 0
      %p107 = por %p105, %p106
      %p108 = scmp.ne.s32.totalorder %s97, %s100
      %p109 = scmp.eq.s32.totalorder %s28, 3
      %p110 = por %p108, %p109
      %p111 = scmp.ne.s32.totalorder %s100, %s101
      %p112 = scmp.eq.s32.totalorder %s28, 0
      %p113 = por %p111, %p112
      %p114 = scmp.ne.s32.totalorder %s100, %s101
      %p115 = scmp.eq.s32.totalorder %s29, 3
      %p116 = por %p114, %p115
      %p118 = scmp.ne.s32.totalorder %s101, %s117
      %p119 = scmp.eq.s32.totalorder %s29, 0
      %p120 = por %p118, %p119
      %s121 = ssub.s32 %s31, %s38
      %p122 = scmp.eq.s32.totalorder %s121, 0
      %s124 = sadd.s32 %s123, 1
      %s125 = scalar_select %p122, %s123, %s124
      %p128 = pneg %p122
      %p129 = scmp.eq.s32.totalorder %s23, 3
      %p130 = por %p128, %p129
      %p131 = scmp.ne.s32.totalorder %s123, %s126
      %p132 = scmp.eq.s32.totalorder %s23, 0
      %p133 = por %p131, %p132
      %p134 = scmp.ne.s32.totalorder %s123, %s126
      %p135 = scmp.eq.s32.totalorder %s28, 3
      %p136 = por %p134, %p135
      %p137 = scmp.ne.s32.totalorder %s126, %s127
      %p138 = scmp.eq.s32.totalorder %s28, 0
      %p139 = por %p137, %p138
      %p140 = scmp.ne.s32.totalorder %s126, %s127
      %p141 = scmp.eq.s32.totalorder %s29, 3
      %p142 = por %p140, %p141
      %p144 = scmp.ne.s32.totalorder %s127, %s143
      %p145 = scmp.eq.s32.totalorder %s29, 0
      %p146 = por %p144, %p145
      %s147 = ssub.s32 %s31, %s38
      %p148 = scmp.eq.s32.totalorder %s147, 0
      %s150 = sadd.s32 %s149, 1
      %s151 = scalar_select %p148, %s149, %s150
      %p154 = pneg %p148
      %p155 = scmp.eq.s32.totalorder %s23, 3
      %p156 = por %p154, %p155
      %p157 = scmp.ne.s32.totalorder %s149, %s152
      %p158 = scmp.eq.s32.totalorder %s23, 0
      %p159 = por %p157, %p158
      %p160 = scmp.ne.s32.totalorder %s149, %s152
      %p161 = scmp.eq.s32.totalorder %s28, 3
      %p162 = por %p160, %p161
      %p163 = scmp.ne.s32.totalorder %s152, %s153
      %p164 = scmp.eq.s32.totalorder %s28, 0
      %p165 = por %p163, %p164
      %p166 = scmp.ne.s32.totalorder %s152, %s153
      %p167 = scmp.eq.s32.totalorder %s29, 3
      %p168 = por %p166, %p167
      %p170 = scmp.ne.s32.totalorder %s153, %s169
      %p171 = scmp.eq.s32.totalorder %s29, 0
      %p172 = por %p170, %p171
      %s173 = ssub.s32 %s31, %s38
      %p174 = scmp.eq.s32.totalorder %s173, 0
      %s176 = sadd.s32 %s175, 1
      %s177 = scalar_select %p174, %s175, %s176
      %p180 = pneg %p174
      %p181 = scmp.eq.s32.totalorder %s23, 3
      %p182 = por %p180, %p181
      %p183 = scmp.ne.s32.totalorder %s175, %s178
      %p184 = scmp.eq.s32.totalorder %s23, 0
      %p185 = por %p183, %p184
      %p186 = scmp.ne.s32.totalorder %s175, %s178
      %p187 = scmp.eq.s32.totalorder %s28, 3
      %p188 = por %p186, %p187
      %p189 = scmp.ne.s32.totalorder %s178, %s179
      %p190 = scmp.eq.s32.totalorder %s28, 0
      %p191 = por %p189, %p190
      %p192 = scmp.ne.s32.totalorder %s178, %s179
      %p193 = scmp.eq.s32.totalorder %s29, 3
      %p194 = por %p192, %p193
      %p196 = scmp.ne.s32.totalorder %s179, %s195
      %p197 = scmp.eq.s32.totalorder %s29, 0
      %p198 = por %p196, %p197
      %s199 = ssub.s32 %s31, %s38
      %p200 = scmp.eq.s32.totalorder %s199, 0
      %s202 = sadd.s32 %s201, 1
      %s203 = scalar_select %p200, %s201, %s202
      %p206 = pneg %p200
      %p207 = scmp.eq.s32.totalorder %s23, 3
      %p208 = por %p206, %p207
      %p209 = scmp.ne.s32.totalorder %s201, %s204
      %p210 = scmp.eq.s32.totalorder %s23, 0
      %p211 = por %p209, %p210
      %p212 = scmp.ne.s32.totalorder %s201, %s204
      %p213 = scmp.eq.s32.totalorder %s28, 3
      %p214 = por %p212, %p213
      %p215 = scmp.ne.s32.totalorder %s204, %s205
      %p216 = scmp.eq.s32.totalorder %s28, 0
      %p217 = por %p215, %p216
      %p218 = scmp.ne.s32.totalorder %s204, %s205
      %p219 = scmp.eq.s32.totalorder %s29, 3
      %p220 = por %p218, %p219
      %p222 = scmp.ne.s32.totalorder %s205, %s221
      %p223 = scmp.eq.s32.totalorder %s29, 0
      %p224 = por %p222, %p223
      %s225 = ssub.s32 %s31, %s38
      %p226 = scmp.eq.s32.totalorder %s225, 0
      %s228 = sadd.s32 %s227, 1
      %s229 = scalar_select %p226, %s227, %s228
      %p232 = pneg %p226
      %p233 = scmp.eq.s32.totalorder %s23, 3
      %p234 = por %p232, %p233
      %p235 = scmp.ne.s32.totalorder %s227, %s230
      %p236 = scmp.eq.s32.totalorder %s23, 0
      %p237 = por %p235, %p236
      %p238 = scmp.ne.s32.totalorder %s227, %s230
      %p239 = scmp.eq.s32.totalorder %s28, 3
      %p240 = por %p238, %p239
      %p241 = scmp.ne.s32.totalorder %s230, %s231
      %p242 = scmp.eq.s32.totalorder %s28, 0
      %p243 = por %p241, %p242
      %p244 = scmp.ne.s32.totalorder %s230, %s231
      %p245 = scmp.eq.s32.totalorder %s29, 3
      %p246 = por %p244, %p245
      %p248 = scmp.ne.s32.totalorder %s231, %s247
      %p249 = scmp.eq.s32.totalorder %s29, 0
      %p250 = por %p248, %p249
      %s251 = ssub.s32 %s30, %s42
      %p252 = scmp.eq.s32.totalorder %s251, 0
      %s254 = sadd.s32 %s253, 1
      %s255 = scalar_select %p252, %s253, %s254
      %p258 = pneg %p252
      %p259 = scmp.eq.s32.totalorder %s23, 3
      %p260 = por %p258, %p259
      %p261 = scmp.ne.s32.totalorder %s253, %s256
      %p262 = scmp.eq.s32.totalorder %s23, 0
      %p263 = por %p261, %p262
      %p264 = scmp.ne.s32.totalorder %s253, %s256
      %p265 = scmp.eq.s32.totalorder %s28, 3
      %p266 = por %p264, %p265
      %p267 = scmp.ne.s32.totalorder %s256, %s257
      %p268 = scmp.eq.s32.totalorder %s28, 0
      %p269 = por %p267, %p268
      %p270 = scmp.ne.s32.totalorder %s256, %s257
      %p271 = scmp.eq.s32.totalorder %s29, 3
      %p272 = por %p270, %p271
      %p274 = scmp.ne.s32.totalorder %s257, %s273
      %p275 = scmp.eq.s32.totalorder %s29, 0
      %p276 = por %p274, %p275
      %p277 = scmp.le.s32.totalorder 1, %s23
      %p278 = scmp.lt.s32.totalorder %s23, 5
      %p279 = pnand %p277, %p278
      %p280 = pneg %p279
      // Predicated region
      $region9: #{tpu_custom_call.1} parent=5 // pred_check
        _
      $region10: #{tpu_custom_call.1} parent=5 // pred_check_branch
        %282 = sbr.rel (%p279) target = $region12
      $region11: #{tpu_custom_call.1} parent=5 // pred_region
        %s283 = ssub.s32 %s23, 1
      $region12: #{tpu_custom_call.1} parent=5 // pred_fallthru
        _
      %p284 = scmp.lt.s32.totalorder %s23, 4
      // Predicated region
      $region13: #{tpu_custom_call.1} parent=5 // pred_check
        %p285 = pneg %p284
      $region14: #{tpu_custom_call.1} parent=5 // pred_check_branch
        %287 = sbr.rel (%p285) target = $region16
      $region15: #{tpu_custom_call.1} parent=5 // pred_region
        // Predicated region
        $region17: #{tpu_custom_call.1} parent=15 // pred_check
          %p288 = pneg %p55
        $region18: #{tpu_custom_call.1} parent=15 // pred_check_branch
          %290 = sbr.rel (%p288) target = $region20
        $region19: #{tpu_custom_call.1} parent=15 // pred_region
          %s291 = sand.u32 %s45, 1
          %s292 = scalar_lea.sflag [#allocation3], %s291
          %s293 = sand.u32 %s45, 1
          %s294 = smul.addr %s293, 8
          %s295 = scalar_lea.vmem [#allocation2], %s294
          %s297 = ssub.s32 128, 128
          %298 = vsyncadd %s292, %s297
          %s299 = smul.addr %s30, 128
          %s300 = scalar_lea.hbm %s0, %s299
          %s302 = sshll.u32 %s295, 4
          %s303 = int_to_ptr.vmem [resolvable:$true] %s302
          %305 = dma.hbm_to_vmem [thread:$0]  %s300, 128, %s303, %s292
        $region20: #{tpu_custom_call.1} parent=15 // pred_fallthru
          _
        // Predicated region
        $region21: #{tpu_custom_call.1} parent=15 // pred_check
          %p306 = pneg %p81
        $region22: #{tpu_custom_call.1} parent=15 // pred_check_branch
          %308 = sbr.rel (%p306) target = $region24
        $region23: #{tpu_custom_call.1} parent=15 // pred_region
          %s309 = sand.u32 %s71, 1
          %s310 = scalar_lea.sflag [#allocation6], %s309
          %s311 = sand.u32 %s71, 1
          %s312 = scalar_lea.vmem [#allocation5], %s311
          %s314 = ssub.s32 16, 16
          %315 = vsyncadd %s310, %s314
          %s316 = smul.addr %s30, 16
          %s317 = scalar_lea.hbm %s1, %s316
          %s319 = sshll.u32 %s312, 4
          %s320 = int_to_ptr.vmem [resolvable:$true] %s319
          %322 = dma.hbm_to_vmem [thread:$0]  %s317, 16, %s320, %s310
        $region24: #{tpu_custom_call.1} parent=15 // pred_fallthru
          _
        // Predicated region
        $region25: #{tpu_custom_call.1} parent=15 // pred_check
          %p323 = pneg %p107
        $region26: #{tpu_custom_call.1} parent=15 // pred_check_branch
          %325 = sbr.rel (%p323) target = $region28
        $region27: #{tpu_custom_call.1} parent=15 // pred_region
          %p326 = scmp.lt.s32.totalorder %s31, 1
          %s327 = scalar_select %p326, %s31, 1
          %s328 = smul.addr %s327, 12
          %s329 = smul.addr %s328, 4
          %s330 = scalar_lea.vmem %s2, %s329
        $region28: #{tpu_custom_call.1} parent=15 // pred_fallthru
          _
        // Predicated region
        $region29: #{tpu_custom_call.1} parent=15 // pred_check
          %p331 = pneg %p133
        $region30: #{tpu_custom_call.1} parent=15 // pred_check_branch
          %333 = sbr.rel (%p331) target = $region32
        $region31: #{tpu_custom_call.1} parent=15 // pred_region
          %p334 = scmp.lt.s32.totalorder %s31, 1
          %s335 = scalar_select %p334, %s31, 1
          %s336 = smul.addr %s335, 4
          %s337 = smul.addr %s336, 4
          %s338 = scalar_lea.vmem %s3, %s337
        $region32: #{tpu_custom_call.1} parent=15 // pred_fallthru
          _
        // Predicated region
        $region33: #{tpu_custom_call.1} parent=15 // pred_check
          %p339 = pneg %p159
        $region34: #{tpu_custom_call.1} parent=15 // pred_check_branch
          %341 = sbr.rel (%p339) target = $region36
        $region35: #{tpu_custom_call.1} parent=15 // pred_region
          %p342 = scmp.lt.s32.totalorder %s31, 1
          %s343 = scalar_select %p342, %s31, 1
          %s344 = smul.addr %s343, 4
          %s345 = smul.addr %s344, 4
          %s346 = scalar_lea.vmem %s4, %s345
        $region36: #{tpu_custom_call.1} parent=15 // pred_fallthru
          _
        // Predicated region
        $region37: #{tpu_custom_call.1} parent=15 // pred_check
          %p347 = pneg %p185
        $region38: #{tpu_custom_call.1} parent=15 // pred_check_branch
          %349 = sbr.rel (%p347) target = $region40
        $region39: #{tpu_custom_call.1} parent=15 // pred_region
          %p350 = scmp.lt.s32.totalorder %s31, 1
          %s351 = scalar_select %p350, %s31, 1
          %s352 = scalar_lea.vmem %s5, %s351
        $region40: #{tpu_custom_call.1} parent=15 // pred_fallthru
          _
        // Predicated region
        $region41: #{tpu_custom_call.1} parent=15 // pred_check
          %p353 = pneg %p211
        $region42: #{tpu_custom_call.1} parent=15 // pred_check_branch
          %355 = sbr.rel (%p353) target = $region44
        $region43: #{tpu_custom_call.1} parent=15 // pred_region
          %p356 = scmp.lt.s32.totalorder %s31, 1
          %s357 = scalar_select %p356, %s31, 1
          %s358 = smul.addr %s357, 8
          %s359 = smul.addr %s358, 4
          %s360 = scalar_lea.vmem %s6, %s359
        $region44: #{tpu_custom_call.1} parent=15 // pred_fallthru
          _
        // Predicated region
        $region45: #{tpu_custom_call.1} parent=15 // pred_check
          %p361 = pneg %p237
        $region46: #{tpu_custom_call.1} parent=15 // pred_check_branch
          %363 = sbr.rel (%p361) target = $region48
        $region47: #{tpu_custom_call.1} parent=15 // pred_region
          %p364 = scmp.lt.s32.totalorder %s31, 1
          %s365 = scalar_select %p364, %s31, 1
          %s366 = smul.addr %s365, 2
          %s367 = smul.addr %s366, 8
          %s368 = scalar_lea.vmem %s7, %s367
        $region48: #{tpu_custom_call.1} parent=15 // pred_fallthru
          _
      $region16: #{tpu_custom_call.1} parent=5 // pred_fallthru
        _
      %p369 = scmp.le.s32.totalorder 1, %s23
      %p370 = scmp.lt.s32.totalorder %s23, 5
      %p371 = pnand %p369, %p370
      %p372 = pneg %p371
      // Predicated region
      $region49: #{tpu_custom_call.1} parent=5 // pred_check
        _
      $region50: #{tpu_custom_call.1} parent=5 // pred_check_branch
        %374 = sbr.rel (%p371) target = $region52
      $region51: #{tpu_custom_call.1} parent=5 // pred_region
        %s375 = ssub.s32 %s23, 1
        %s376 = sand.u32 %s48, 1
        %s377 = scalar_lea.sflag [#allocation3], %s376
        %s378 = sand.u32 %s48, 1
        %s379 = smul.addr %s378, 8
        %s380 = scalar_lea.vmem [#allocation2], %s379
        // Predicated region
        $region53: #{tpu_custom_call.1} parent=51 // pred_check
          %p381 = pneg %p61
        $region54: #{tpu_custom_call.1} parent=51 // pred_check_branch
          %383 = sbr.rel (%p381) target = $region56
        $region55: #{tpu_custom_call.1} parent=51 // pred_region
          %384 = dma.done %s377, 128
        $region56: #{tpu_custom_call.1} parent=51 // pred_fallthru
          _
        %s385 = sand.u32 %s74, 1
        %s386 = scalar_lea.sflag [#allocation6], %s385
        %s387 = sand.u32 %s74, 1
        %s388 = scalar_lea.vmem [#allocation5], %s387
        // Predicated region
        $region57: #{tpu_custom_call.1} parent=51 // pred_check
          %p389 = pneg %p87
        $region58: #{tpu_custom_call.1} parent=51 // pred_check_branch
          %391 = sbr.rel (%p389) target = $region60
        $region59: #{tpu_custom_call.1} parent=51 // pred_region
          %392 = dma.done %s386, 16
        $region60: #{tpu_custom_call.1} parent=51 // pred_fallthru
          _
        %s393 = sand.u32 %s48, 1
        %s394 = scalar_lea.sflag [#allocation3], %s393
        %s395 = sand.u32 %s48, 1
        %s396 = smul.addr %s395, 8
        %s397 = scalar_lea.vmem [#allocation2], %s396
        %p398 = pneg %p61
        %p399 = pneg %p58
        %s400 = sand.u32 %s74, 1
        %s401 = scalar_lea.sflag [#allocation6], %s400
        %s402 = sand.u32 %s74, 1
        %s403 = scalar_lea.vmem [#allocation5], %s402
        %p404 = pneg %p87
        %p405 = pneg %p84
        %p406 = scmp.lt.s32.totalorder %s33, 1
        %s407 = scalar_select %p406, %s33, 1
        %s408 = smul.addr %s407, 12
        %s409 = smul.addr %s408, 4
        %s410 = scalar_lea.vmem %s2, %s409
        %p411 = pneg %p113
        %p412 = pneg %p110
        %p413 = scmp.lt.s32.totalorder %s33, 1
        %s414 = scalar_select %p413, %s33, 1
        %s415 = smul.addr %s414, 4
        %s416 = smul.addr %s415, 4
        %s417 = scalar_lea.vmem %s3, %s416
        %p418 = pneg %p139
        %p419 = pneg %p136
        %p420 = scmp.lt.s32.totalorder %s33, 1
        %s421 = scalar_select %p420, %s33, 1
        %s422 = smul.addr %s421, 4
        %s423 = smul.addr %s422, 4
        %s424 = scalar_lea.vmem %s4, %s423
        %p425 = pneg %p165
        %p426 = pneg %p162
        %p427 = scmp.lt.s32.totalorder %s33, 1
        %s428 = scalar_select %p427, %s33, 1
        %s429 = scalar_lea.vmem %s5, %s428
        %p430 = pneg %p191
        %p431 = pneg %p188
        %p432 = scmp.lt.s32.totalorder %s33, 1
        %s433 = scalar_select %p432, %s33, 1
        %s434 = smul.addr %s433, 8
        %s435 = smul.addr %s434, 4
        %s436 = scalar_lea.vmem %s6, %s435
        %p437 = pneg %p217
        %p438 = pneg %p214
        %p439 = scmp.lt.s32.totalorder %s33, 1
        %s440 = scalar_select %p439, %s33, 1
        %s441 = smul.addr %s440, 2
        %s442 = smul.addr %s441, 8
        %s443 = scalar_lea.vmem %s7, %s442
        %p444 = pneg %p243
        %p445 = pneg %p240
        %p446 = pneg %p269
        %p447 = pneg %p266
        %s448 = sand.u32 %s256, 1
        %s449 = scalar_lea.sflag [#allocation4], %s448
        %s450 = sand.u32 %s256, 1
        %s451 = smul.addr %s450, 8
        %s452 = scalar_lea.vmem [#allocation7], %s451
        %p453 = scmp.lt.s32.totalorder %s33, 1
        %s454 = scalar_select %p453, %s33, 1
        %s455 = smul.addr %s454, 12
        %s456 = smul.addr %s455, 4
        %s457 = scalar_lea.vmem %s2, %s456
        %p458 = scmp.lt.s32.totalorder %s33, 1
        %s459 = scalar_select %p458, %s33, 1
        %s460 = smul.addr %s459, 4
        %s461 = smul.addr %s460, 4
        %s462 = scalar_lea.vmem %s3, %s461
        %p463 = scmp.lt.s32.totalorder %s33, 1
        %s464 = scalar_select %p463, %s33, 1
        %s465 = smul.addr %s464, 4
        %s466 = smul.addr %s465, 4
        %s467 = scalar_lea.vmem %s4, %s466
        %p468 = scmp.lt.s32.totalorder %s33, 1
        %s469 = scalar_select %p468, %s33, 1
        %s470 = scalar_lea.vmem %s5, %s469
        %p471 = scmp.lt.s32.totalorder %s33, 1
        %s472 = scalar_select %p471, %s33, 1
        %s473 = smul.addr %s472, 8
        %s474 = smul.addr %s473, 4
        %s475 = scalar_lea.vmem %s6, %s474
        %p476 = scmp.lt.s32.totalorder %s33, 1
        %s477 = scalar_select %p476, %s33, 1
        %s478 = smul.addr %s477, 2
        %s479 = smul.addr %s478, 8
        %s480 = scalar_lea.vmem %s7, %s479
        %p482 = scmp.eq.s32.totalorder %s33, 0
        // Predicated region
        $region61: #{tpu_custom_call.1} parent=51 // pred_check
          %p483 = pneg %p482
        $region62: #{tpu_custom_call.1} parent=51 // pred_check_branch
          %485 = sbr.rel (%p483) target = $region64
        $region63: #{tpu_custom_call.1} parent=51 // pred_region
          %v486 = vld [vmem:[%s380] sm:$0xff]
          %vm487 = vcmask 261120
          %488 = vst.msk [vmem:[%s452] sm:$0xff] %vm487, %v486
        $region64: #{tpu_custom_call.1} parent=51 // pred_fallthru
          _
        %v489 = vld [vmem:[%s452] sm:$0xff]
        %v490 = vld [vmem:[%s388] sm:$0x1]
        %v491 = vld [vmem:[%s480] sm:$0xff]
        %v492 = vld [vmem:[%s480 + $0x8] sm:$0x1]
        %v493 = vpack.c.bf16 %v489, %v489
        %v494 = vld [vmem:[%s457] sm:$0xf]
        %v495 = vld [vmem:[%s457 + $0x4] sm:$0xf]
        %v496 = vld [vmem:[%s457 + $0x8] sm:$0xf]
        %v497 = vld [vmem:[%s457 + $0xc] sm:$0xf]
        %v498 = vlaneseq
        %v499 = vshrl.u32 %v498, 7
        %v500 = vsub.s32 0, %v499
        %v501 = vrot.slane %v491, %v500
        %v506 = vunpack.c.l.b16 %v494
        %v507 = vunpack.c.l.b16 %v495
        %v508 = vunpack.c.l.b16 %v496
        %v509 = vunpack.c.l.b16 %v497
        %v510 = vpack.c.b16 %v507, %v506
        %v511 = vpack.c.b16 %v509, %v508
        %vm514 = vcmask 261120
        %v516 = vsel %vm514, %v493, 0
        %518 = vmatprep.subr.bf16.mxu0 0
        %519 = vmatpush1.bf16.msra.mxu0 %v510
        %520 = vmatprep.subr.bf16.mxu0 0
        %521 = vmatpush1.bf16.msra.mxu0 %v511
        %522 = vmatprep.subr.bf16.mxu0 0
        %523 = vmatpush1.bf16.msra.mxu0 0
        %524 = vmatprep.subr.bf16.mxu0 0
        %525 = vmatpush1.bf16.msra.mxu0 0
        %526 = vmatprep.subr.bf16.mxu0 0
        %527 = vmatpush1.bf16.msra.mxu0 0
        %528 = vmatprep.subr.bf16.mxu0 0
        %529 = vmatpush1.bf16.msra.mxu0 0
        %530 = vmatprep.subr.bf16.mxu0 0
        %531 = vmatpush1.bf16.msra.mxu0 0
        %532 = vmatprep.subr.bf16.mxu0 0
        %533 = vmatpush1.bf16.msra.mxu0 0
        %534 = vmatprep.subr.bf16.mxu0 0
        %535 = vmatpush1.bf16.msra.mxu0 0
        %536 = vmatprep.subr.bf16.mxu0 0
        %537 = vmatpush1.bf16.msra.mxu0 0
        %538 = vmatprep.subr.bf16.mxu0 0
        %539 = vmatpush1.bf16.msra.mxu0 0
        %540 = vmatprep.subr.bf16.mxu0 0
        %541 = vmatpush1.bf16.msra.mxu0 0
        %542 = vmatprep.subr.bf16.mxu0 0
        %543 = vmatpush1.bf16.msra.mxu0 0
        %544 = vmatprep.subr.bf16.mxu0 0
        %545 = vmatpush1.bf16.msra.mxu0 0
        %546 = vmatprep.subr.bf16.mxu0 0
        %547 = vmatpush1.bf16.msra.mxu0 0
        %548 = vmatprep.subr.bf16.mxu0 0
        %549 = vmatpush1.bf16.msra.mxu0 0
        %550 = vmatprep.mubr.bf16.mxu0 0
        %551 = vmatmul.mubr.bf16.gmra.mrb[0].mxu0 %v516
        %v552 = vpop.f32.mrb[0].mxu0
        %v553 = vadd.f32 %v501, %v552
        %v554 = vpop.f32.mrb[0].mxu0
        %v555 = vpop.f32.mrb[0].mxu0
        %v556 = vpop.f32.mrb[0].mxu0
        %557 = vdwg.mxu0
        %s558 = scalar_lea.vmem %s457, 16
        %v559 = vld [vmem:[%s558] sm:$0xf]
        %v560 = vld [vmem:[%s558 + $0x4] sm:$0xf]
        %v561 = vld [vmem:[%s558 + $0x8] sm:$0xf]
        %v562 = vld [vmem:[%s558 + $0xc] sm:$0xf]
        %v563 = vlaneseq
        %v564 = vshrl.u32 %v563, 7
        %v565 = vsub.s32 1, %v564
        %v566 = vrot.slane %v491, %v565
        %v571 = vunpack.c.l.b16 %v559
        %v572 = vunpack.c.l.b16 %v560
        %v573 = vunpack.c.l.b16 %v561
        %v574 = vunpack.c.l.b16 %v562
        %v575 = vpack.c.b16 %v572, %v571
        %v576 = vpack.c.b16 %v574, %v573
        %579 = vmatprep.subr.bf16.mxu0 0
        %580 = vmatpush1.bf16.msra.mxu0 %v575
        %581 = vmatprep.subr.bf16.mxu0 0
        %582 = vmatpush1.bf16.msra.mxu0 %v576
        %583 = vmatprep.subr.bf16.mxu0 0
        %584 = vmatpush1.bf16.msra.mxu0 0
        %585 = vmatprep.subr.bf16.mxu0 0
        %586 = vmatpush1.bf16.msra.mxu0 0
        %587 = vmatprep.subr.bf16.mxu0 0
        %588 = vmatpush1.bf16.msra.mxu0 0
        %589 = vmatprep.subr.bf16.mxu0 0
        %590 = vmatpush1.bf16.msra.mxu0 0
        %591 = vmatprep.subr.bf16.mxu0 0
        %592 = vmatpush1.bf16.msra.mxu0 0
        %593 = vmatprep.subr.bf16.mxu0 0
        %594 = vmatpush1.bf16.msra.mxu0 0
        %595 = vmatprep.subr.bf16.mxu0 0
        %596 = vmatpush1.bf16.msra.mxu0 0
        %597 = vmatprep.subr.bf16.mxu0 0
        %598 = vmatpush1.bf16.msra.mxu0 0
        %599 = vmatprep.subr.bf16.mxu0 0
        %600 = vmatpush1.bf16.msra.mxu0 0
        %601 = vmatprep.subr.bf16.mxu0 0
        %602 = vmatpush1.bf16.msra.mxu0 0
        %603 = vmatprep.subr.bf16.mxu0 0
        %604 = vmatpush1.bf16.msra.mxu0 0
        %605 = vmatprep.subr.bf16.mxu0 0
        %606 = vmatpush1.bf16.msra.mxu0 0
        %607 = vmatprep.subr.bf16.mxu0 0
        %608 = vmatpush1.bf16.msra.mxu0 0
        %609 = vmatprep.subr.bf16.mxu0 0
        %610 = vmatpush1.bf16.msra.mxu0 0
        %611 = vmatprep.mubr.bf16.mxu0 0
        %612 = vmatmul.mubr.bf16.gmra.mrb[0].mxu0 %v516
        %v613 = vpop.f32.mrb[0].mxu0
        %v614 = vadd.f32 %v566, %v613
        %v615 = vpop.f32.mrb[0].mxu0
        %v616 = vpop.f32.mrb[0].mxu0
        %v617 = vpop.f32.mrb[0].mxu0
        %618 = vdwg.mxu0
        %s619 = scalar_lea.vmem %s457, 32
        %v620 = vld [vmem:[%s619] sm:$0xf]
        %v621 = vld [vmem:[%s619 + $0x4] sm:$0xf]
        %v622 = vld [vmem:[%s619 + $0x8] sm:$0xf]
        %v623 = vld [vmem:[%s619 + $0xc] sm:$0xf]
        %v624 = vlaneseq
        %v625 = vshrl.u32 %v624, 7
        %v626 = vsub.s32 2, %v625
        %v627 = vrot.slane %v491, %v626
        %v632 = vunpack.c.l.b16 %v620
        %v633 = vunpack.c.l.b16 %v621
        %v634 = vunpack.c.l.b16 %v622
        %v635 = vunpack.c.l.b16 %v623
        %v636 = vpack.c.b16 %v633, %v632
        %v637 = vpack.c.b16 %v635, %v634
        %640 = vmatprep.subr.bf16.mxu0 0
        %641 = vmatpush1.bf16.msra.mxu0 %v636
        %642 = vmatprep.subr.bf16.mxu0 0
        %643 = vmatpush1.bf16.msra.mxu0 %v637
        %644 = vmatprep.subr.bf16.mxu0 0
        %645 = vmatpush1.bf16.msra.mxu0 0
        %646 = vmatprep.subr.bf16.mxu0 0
        %647 = vmatpush1.bf16.msra.mxu0 0
        %648 = vmatprep.subr.bf16.mxu0 0
        %649 = vmatpush1.bf16.msra.mxu0 0
        %650 = vmatprep.subr.bf16.mxu0 0
        %651 = vmatpush1.bf16.msra.mxu0 0
        %652 = vmatprep.subr.bf16.mxu0 0
        %653 = vmatpush1.bf16.msra.mxu0 0
        %654 = vmatprep.subr.bf16.mxu0 0
        %655 = vmatpush1.bf16.msra.mxu0 0
        %656 = vmatprep.subr.bf16.mxu0 0
        %657 = vmatpush1.bf16.msra.mxu0 0
        %658 = vmatprep.subr.bf16.mxu0 0
        %659 = vmatpush1.bf16.msra.mxu0 0
        %660 = vmatprep.subr.bf16.mxu0 0
        %661 = vmatpush1.bf16.msra.mxu0 0
        %662 = vmatprep.subr.bf16.mxu0 0
        %663 = vmatpush1.bf16.msra.mxu0 0
        %664 = vmatprep.subr.bf16.mxu0 0
        %665 = vmatpush1.bf16.msra.mxu0 0
        %666 = vmatprep.subr.bf16.mxu0 0
        %667 = vmatpush1.bf16.msra.mxu0 0
        %668 = vmatprep.subr.bf16.mxu0 0
        %669 = vmatpush1.bf16.msra.mxu0 0
        %670 = vmatprep.subr.bf16.mxu0 0
        %671 = vmatpush1.bf16.msra.mxu0 0
        %672 = vmatprep.mubr.bf16.mxu0 0
        %673 = vmatmul.mubr.bf16.gmra.mrb[0].mxu0 %v516
        %v674 = vpop.f32.mrb[0].mxu0
        %v675 = vadd.f32 %v627, %v674
        %v676 = vpop.f32.mrb[0].mxu0
        %v677 = vpop.f32.mrb[0].mxu0
        %v678 = vpop.f32.mrb[0].mxu0
        %679 = vdwg.mxu0
        %681 = vrot.lane.b32.xlu0 %v553, 120
        %v682 = vpop.permute.xlu0 %681
        %683 = vrot.lane.b32.xlu0 %v553, 112
        %v684 = vpop.permute.xlu0 %683
        %685 = vrot.lane.b32.xlu0 %v553, 104
        %v686 = vpop.permute.xlu0 %685
        %688 = vrot.lane.b32.xlu0 %v614, 120
        %v689 = vpop.permute.xlu0 %688
        %691 = vrot.lane.b32.xlu0 %v614, 112
        %v692 = vpop.permute.xlu0 %691
        %694 = vrot.lane.b32.xlu0 %v614, 104
        %v695 = vpop.permute.xlu0 %694
        %698 = vrot.lane.b32.xlu0 %v675, 120
        %v699 = vpop.permute.xlu0 %698
        %701 = vrot.lane.b32.xlu0 %v675, 112
        %v702 = vpop.permute.xlu0 %701
        %704 = vrot.lane.b32.xlu0 %v675, 104
        %v705 = vpop.permute.xlu0 %704
        %v708 = vlaneseq
        %v709 = vshrl.u32 %v708, 7
        %v710 = vsub.s32 0, %v709
        %v711 = vrot.slane %v490, %v710
        %713 = vxpose.xlu0.b32.start [1/16] %v614, 128
        %714 = vxpose.xlu0.b32.cont [2/16] 0.0, 128
        %715 = vxpose.xlu0.b32.cont [3/16] 0.0, 128
        %716 = vxpose.xlu0.b32.cont [4/16] 0.0, 128
        %717 = vxpose.xlu0.b32.cont [5/16] 0.0, 128
        %718 = vxpose.xlu0.b32.cont [6/16] 0.0, 128
        %719 = vxpose.xlu0.b32.cont [7/16] 0.0, 128
        %720 = vxpose.xlu0.b32.cont [8/16] 0.0, 128
        %721 = vxpose.xlu0.b32.cont [9/16] 0.0, 128
        %722 = vxpose.xlu0.b32.cont [10/16] 0.0, 128
        %723 = vxpose.xlu0.b32.cont [11/16] 0.0, 128
        %724 = vxpose.xlu0.b32.cont [12/16] 0.0, 128
        %725 = vxpose.xlu0.b32.cont [13/16] 0.0, 128
        %726 = vxpose.xlu0.b32.cont [14/16] 0.0, 128
        %727 = vxpose.xlu0.b32.cont [15/16] 0.0, 128
        %728 = vxpose.xlu0.b32.end [16/16] 0.0, 128
        %v729 = vpop.trf.xlu0
        %v730 = vpop.trf.xlu0
        %v731 = vpop.trf.xlu0
        %v732 = vpop.trf.xlu0
        %v733 = vpop.trf.xlu0
        %v734 = vpop.trf.xlu0
        %v735 = vpop.trf.xlu0
        %v736 = vpop.trf.xlu0
        %v737 = vpop.trf.xlu0
        %v738 = vpop.trf.xlu0
        %v739 = vpop.trf.xlu0
        %v740 = vpop.trf.xlu0
        %v741 = vpop.trf.xlu0
        %v742 = vpop.trf.xlu0
        %v743 = vpop.trf.xlu0
        %v744 = vpop.trf.xlu0
        %745 = vxpose.xlu0.b32.start [1/16] %v689, 128
        %746 = vxpose.xlu0.b32.cont [2/16] 0.0, 128
        %747 = vxpose.xlu0.b32.cont [3/16] 0.0, 128
        %748 = vxpose.xlu0.b32.cont [4/16] 0.0, 128
        %749 = vxpose.xlu0.b32.cont [5/16] 0.0, 128
        %750 = vxpose.xlu0.b32.cont [6/16] 0.0, 128
        %751 = vxpose.xlu0.b32.cont [7/16] 0.0, 128
        %752 = vxpose.xlu0.b32.cont [8/16] 0.0, 128
        %753 = vxpose.xlu0.b32.cont [9/16] 0.0, 128
        %754 = vxpose.xlu0.b32.cont [10/16] 0.0, 128
        %755 = vxpose.xlu0.b32.cont [11/16] 0.0, 128
        %756 = vxpose.xlu0.b32.cont [12/16] 0.0, 128
        %757 = vxpose.xlu0.b32.cont [13/16] 0.0, 128
        %758 = vxpose.xlu0.b32.cont [14/16] 0.0, 128
        %759 = vxpose.xlu0.b32.cont [15/16] 0.0, 128
        %760 = vxpose.xlu0.b32.end [16/16] 0.0, 128
        %v761 = vpop.trf.xlu0
        %v762 = vpop.trf.xlu0
        %v763 = vpop.trf.xlu0
        %v764 = vpop.trf.xlu0
        %v765 = vpop.trf.xlu0
        %v766 = vpop.trf.xlu0
        %v767 = vpop.trf.xlu0
        %v768 = vpop.trf.xlu0
        %v769 = vpop.trf.xlu0
        %v770 = vpop.trf.xlu0
        %v771 = vpop.trf.xlu0
        %v772 = vpop.trf.xlu0
        %v773 = vpop.trf.xlu0
        %v774 = vpop.trf.xlu0
        %v775 = vpop.trf.xlu0
        %v776 = vpop.trf.xlu0
        %777 = vxpose.xlu0.b32.start [1/16] %v692, 128
        %778 = vxpose.xlu0.b32.cont [2/16] 0.0, 128
        %779 = vxpose.xlu0.b32.cont [3/16] 0.0, 128
        %780 = vxpose.xlu0.b32.cont [4/16] 0.0, 128
        %781 = vxpose.xlu0.b32.cont [5/16] 0.0, 128
        %782 = vxpose.xlu0.b32.cont [6/16] 0.0, 128
        %783 = vxpose.xlu0.b32.cont [7/16] 0.0, 128
        %784 = vxpose.xlu0.b32.cont [8/16] 0.0, 128
        %785 = vxpose.xlu0.b32.cont [9/16] 0.0, 128
        %786 = vxpose.xlu0.b32.cont [10/16] 0.0, 128
        %787 = vxpose.xlu0.b32.cont [11/16] 0.0, 128
        %788 = vxpose.xlu0.b32.cont [12/16] 0.0, 128
        %789 = vxpose.xlu0.b32.cont [13/16] 0.0, 128
        %790 = vxpose.xlu0.b32.cont [14/16] 0.0, 128
        %791 = vxpose.xlu0.b32.cont [15/16] 0.0, 128
        %792 = vxpose.xlu0.b32.end [16/16] 0.0, 128
        %v793 = vpop.trf.xlu0
        %v794 = vpop.trf.xlu0
        %v795 = vpop.trf.xlu0
        %v796 = vpop.trf.xlu0
        %v797 = vpop.trf.xlu0
        %v798 = vpop.trf.xlu0
        %v799 = vpop.trf.xlu0
        %v800 = vpop.trf.xlu0
        %v801 = vpop.trf.xlu0
        %v802 = vpop.trf.xlu0
        %v803 = vpop.trf.xlu0
        %v804 = vpop.trf.xlu0
        %v805 = vpop.trf.xlu0
        %v806 = vpop.trf.xlu0
        %v807 = vpop.trf.xlu0
        %v808 = vpop.trf.xlu0
        %809 = vxpose.xlu0.b32.start [1/16] %v695, 128
        %810 = vxpose.xlu0.b32.cont [2/16] 0.0, 128
        %811 = vxpose.xlu0.b32.cont [3/16] 0.0, 128
        %812 = vxpose.xlu0.b32.cont [4/16] 0.0, 128
        %813 = vxpose.xlu0.b32.cont [5/16] 0.0, 128
        %814 = vxpose.xlu0.b32.cont [6/16] 0.0, 128
        %815 = vxpose.xlu0.b32.cont [7/16] 0.0, 128
        %816 = vxpose.xlu0.b32.cont [8/16] 0.0, 128
        %817 = vxpose.xlu0.b32.cont [9/16] 0.0, 128
        %818 = vxpose.xlu0.b32.cont [10/16] 0.0, 128
        %819 = vxpose.xlu0.b32.cont [11/16] 0.0, 128
        %820 = vxpose.xlu0.b32.cont [12/16] 0.0, 128
        %821 = vxpose.xlu0.b32.cont [13/16] 0.0, 128
        %822 = vxpose.xlu0.b32.cont [14/16] 0.0, 128
        %823 = vxpose.xlu0.b32.cont [15/16] 0.0, 128
        %824 = vxpose.xlu0.b32.end [16/16] 0.0, 128
        %v825 = vpop.trf.xlu0
        %v826 = vpop.trf.xlu0
        %v827 = vpop.trf.xlu0
        %v828 = vpop.trf.xlu0
        %v829 = vpop.trf.xlu0
        %v830 = vpop.trf.xlu0
        %v831 = vpop.trf.xlu0
        %v832 = vpop.trf.xlu0
        %v833 = vpop.trf.xlu0
        %v834 = vpop.trf.xlu0
        %v835 = vpop.trf.xlu0
        %v836 = vpop.trf.xlu0
        %v837 = vpop.trf.xlu0
        %v838 = vpop.trf.xlu0
        %v839 = vpop.trf.xlu0
        %v840 = vpop.trf.xlu0
        %vm841 = vcmask 64512
        %v842 = vsel %vm841, %v553, 0
        %844 = vmatprep.subr.mxu0 0.0
        %845 = vmatpush1.msra.mxu0 %v729
        %846 = vmatprep.subr.mxu0 0.0
        %847 = vmatpush1.msra.mxu0 0.0
        %848 = vmatprep.subr.mxu0 0.0
        %849 = vmatpush1.msra.mxu0 0.0
        %850 = vmatprep.subr.mxu0 0.0
        %851 = vmatpush1.msra.mxu0 0.0
        %852 = vmatprep.subr.mxu0 0.0
        %853 = vmatpush1.msra.mxu0 0.0
        %854 = vmatprep.subr.mxu0 0.0
        %855 = vmatpush1.msra.mxu0 0.0
        %856 = vmatprep.subr.mxu0 0.0
        %857 = vmatpush1.msra.mxu0 0.0
        %858 = vmatprep.subr.mxu0 0.0
        %859 = vmatpush1.msra.mxu0 0.0
        %860 = vmatprep.subr.mxu0 0.0
        %861 = vmatpush1.msra.mxu0 0.0
        %862 = vmatprep.subr.mxu0 0.0
        %863 = vmatpush1.msra.mxu0 0.0
        %864 = vmatprep.subr.mxu0 0.0
        %865 = vmatpush1.msra.mxu0 0.0
        %866 = vmatprep.subr.mxu0 0.0
        %867 = vmatpush1.msra.mxu0 0.0
        %868 = vmatprep.subr.mxu0 0.0
        %869 = vmatpush1.msra.mxu0 0.0
        %870 = vmatprep.subr.mxu0 0.0
        %871 = vmatpush1.msra.mxu0 0.0
        %872 = vmatprep.subr.mxu0 0.0
        %873 = vmatpush1.msra.mxu0 0.0
        %874 = vmatprep.subr.mxu0 0.0
        %875 = vmatpush1.msra.mxu0 0.0
        %876 = vmatprep.subr.mxu0 0.0
        %877 = vmatpush1.msra.mxu0 0.0
        %878 = vmatprep.subr.mxu0 0.0
        %879 = vmatpush1.msra.mxu0 0.0
        %880 = vmatprep.subr.mxu0 0.0
        %881 = vmatpush1.msra.mxu0 0.0
        %882 = vmatprep.subr.mxu0 0.0
        %883 = vmatpush1.msra.mxu0 0.0
        %884 = vmatprep.subr.mxu0 0.0
        %885 = vmatpush1.msra.mxu0 0.0
        %886 = vmatprep.subr.mxu0 0.0
        %887 = vmatpush1.msra.mxu0 0.0
        %888 = vmatprep.subr.mxu0 0.0
        %889 = vmatpush1.msra.mxu0 0.0
        %890 = vmatprep.subr.mxu0 0.0
        %891 = vmatpush1.msra.mxu0 0.0
        %892 = vmatprep.subr.mxu0 0.0
        %893 = vmatpush1.msra.mxu0 0.0
        %894 = vmatprep.subr.mxu0 0.0
        %895 = vmatpush1.msra.mxu0 0.0
        %896 = vmatprep.subr.mxu0 0.0
        %897 = vmatpush1.msra.mxu0 0.0
        %898 = vmatprep.subr.mxu0 0.0
        %899 = vmatpush1.msra.mxu0 0.0
        %900 = vmatprep.subr.mxu0 0.0
        %901 = vmatpush1.msra.mxu0 0.0
        %902 = vmatprep.subr.mxu0 0.0
        %903 = vmatpush1.msra.mxu0 0.0
        %904 = vmatprep.subr.mxu0 0.0
        %905 = vmatpush1.msra.mxu0 0.0
        %906 = vmatprep.subr.mxu0 0.0
        %907 = vmatpush1.msra.mxu0 0.0
        %908 = vmatprep.mubr.f32.mxu0 0.0
        %909 = vmatmul.mubr.f32.gmra.mrb[0].mxu0 %v842
        %v910 = vpop.f32.mrb[0].mxu0
        %v911 = vadd.f32 %v711, %v910
        %v912 = vpop.f32.mrb[0].mxu0
        %913 = vdwg.mxu0
        %v914 = vsel %vm841, %v682, 0
        %916 = vmatprep.subr.mxu0 0.0
        %917 = vmatpush1.msra.mxu0 %v761
        %918 = vmatprep.subr.mxu0 0.0
        %919 = vmatpush1.msra.mxu0 0.0
        %920 = vmatprep.subr.mxu0 0.0
        %921 = vmatpush1.msra.mxu0 0.0
        %922 = vmatprep.subr.mxu0 0.0
        %923 = vmatpush1.msra.mxu0 0.0
        %924 = vmatprep.subr.mxu0 0.0
        %925 = vmatpush1.msra.mxu0 0.0
        %926 = vmatprep.subr.mxu0 0.0
        %927 = vmatpush1.msra.mxu0 0.0
        %928 = vmatprep.subr.mxu0 0.0
        %929 = vmatpush1.msra.mxu0 0.0
        %930 = vmatprep.subr.mxu0 0.0
        %931 = vmatpush1.msra.mxu0 0.0
        %932 = vmatprep.subr.mxu0 0.0
        %933 = vmatpush1.msra.mxu0 0.0
        %934 = vmatprep.subr.mxu0 0.0
        %935 = vmatpush1.msra.mxu0 0.0
        %936 = vmatprep.subr.mxu0 0.0
        %937 = vmatpush1.msra.mxu0 0.0
        %938 = vmatprep.subr.mxu0 0.0
        %939 = vmatpush1.msra.mxu0 0.0
        %940 = vmatprep.subr.mxu0 0.0
        %941 = vmatpush1.msra.mxu0 0.0
        %942 = vmatprep.subr.mxu0 0.0
        %943 = vmatpush1.msra.mxu0 0.0
        %944 = vmatprep.subr.mxu0 0.0
        %945 = vmatpush1.msra.mxu0 0.0
        %946 = vmatprep.subr.mxu0 0.0
        %947 = vmatpush1.msra.mxu0 0.0
        %948 = vmatprep.subr.mxu0 0.0
        %949 = vmatpush1.msra.mxu0 0.0
        %950 = vmatprep.subr.mxu0 0.0
        %951 = vmatpush1.msra.mxu0 0.0
        %952 = vmatprep.subr.mxu0 0.0
        %953 = vmatpush1.msra.mxu0 0.0
        %954 = vmatprep.subr.mxu0 0.0
        %955 = vmatpush1.msra.mxu0 0.0
        %956 = vmatprep.subr.mxu0 0.0
        %957 = vmatpush1.msra.mxu0 0.0
        %958 = vmatprep.subr.mxu0 0.0
        %959 = vmatpush1.msra.mxu0 0.0
        %960 = vmatprep.subr.mxu0 0.0
        %961 = vmatpush1.msra.mxu0 0.0
        %962 = vmatprep.subr.mxu0 0.0
        %963 = vmatpush1.msra.mxu0 0.0
        %964 = vmatprep.subr.mxu0 0.0
        %965 = vmatpush1.msra.mxu0 0.0
        %966 = vmatprep.subr.mxu0 0.0
        %967 = vmatpush1.msra.mxu0 0.0
        %968 = vmatprep.subr.mxu0 0.0
        %969 = vmatpush1.msra.mxu0 0.0
        %970 = vmatprep.subr.mxu0 0.0
        %971 = vmatpush1.msra.mxu0 0.0
        %972 = vmatprep.subr.mxu0 0.0
        %973 = vmatpush1.msra.mxu0 0.0
        %974 = vmatprep.subr.mxu0 0.0
        %975 = vmatpush1.msra.mxu0 0.0
        %976 = vmatprep.subr.mxu0 0.0
        %977 = vmatpush1.msra.mxu0 0.0
        %978 = vmatprep.subr.mxu0 0.0
        %979 = vmatpush1.msra.mxu0 0.0
        %980 = vmatprep.mubr.f32.mxu0 0.0
        %981 = vmatmul.mubr.f32.gmra.mrb[0].mxu0 %v914
        %v982 = vpop.f32.mrb[0].mxu0
        %v983 = vadd.f32 %v711, %v982
        %v984 = vpop.f32.mrb[0].mxu0
        %985 = vdwg.mxu0
        %v986 = vsel %vm841, %v684, 0
        %988 = vmatprep.subr.mxu0 0.0
        %989 = vmatpush1.msra.mxu0 %v793
        %990 = vmatprep.subr.mxu0 0.0
        %991 = vmatpush1.msra.mxu0 0.0
        %992 = vmatprep.subr.mxu0 0.0
        %993 = vmatpush1.msra.mxu0 0.0
        %994 = vmatprep.subr.mxu0 0.0
        %995 = vmatpush1.msra.mxu0 0.0
        %996 = vmatprep.subr.mxu0 0.0
        %997 = vmatpush1.msra.mxu0 0.0
        %998 = vmatprep.subr.mxu0 0.0
        %999 = vmatpush1.msra.mxu0 0.0
        %1000 = vmatprep.subr.mxu0 0.0
        %1001 = vmatpush1.msra.mxu0 0.0
        %1002 = vmatprep.subr.mxu0 0.0
        %1003 = vmatpush1.msra.mxu0 0.0
        %1004 = vmatprep.subr.mxu0 0.0
        %1005 = vmatpush1.msra.mxu0 0.0
        %1006 = vmatprep.subr.mxu0 0.0
        %1007 = vmatpush1.msra.mxu0 0.0
        %1008 = vmatprep.subr.mxu0 0.0
        %1009 = vmatpush1.msra.mxu0 0.0
        %1010 = vmatprep.subr.mxu0 0.0
        %1011 = vmatpush1.msra.mxu0 0.0
        %1012 = vmatprep.subr.mxu0 0.0
        %1013 = vmatpush1.msra.mxu0 0.0
        %1014 = vmatprep.subr.mxu0 0.0
        %1015 = vmatpush1.msra.mxu0 0.0
        %1016 = vmatprep.subr.mxu0 0.0
        %1017 = vmatpush1.msra.mxu0 0.0
        %1018 = vmatprep.subr.mxu0 0.0
        %1019 = vmatpush1.msra.mxu0 0.0
        %1020 = vmatprep.subr.mxu0 0.0
        %1021 = vmatpush1.msra.mxu0 0.0
        %1022 = vmatprep.subr.mxu0 0.0
        %1023 = vmatpush1.msra.mxu0 0.0
        %1024 = vmatprep.subr.mxu0 0.0
        %1025 = vmatpush1.msra.mxu0 0.0
        %1026 = vmatprep.subr.mxu0 0.0
        %1027 = vmatpush1.msra.mxu0 0.0
        %1028 = vmatprep.subr.mxu0 0.0
        %1029 = vmatpush1.msra.mxu0 0.0
        %1030 = vmatprep.subr.mxu0 0.0
        %1031 = vmatpush1.msra.mxu0 0.0
        %1032 = vmatprep.subr.mxu0 0.0
        %1033 = vmatpush1.msra.mxu0 0.0
        %1034 = vmatprep.subr.mxu0 0.0
        %1035 = vmatpush1.msra.mxu0 0.0
        %1036 = vmatprep.subr.mxu0 0.0
        %1037 = vmatpush1.msra.mxu0 0.0
        %1038 = vmatprep.subr.mxu0 0.0
        %1039 = vmatpush1.msra.mxu0 0.0
        %1040 = vmatprep.subr.mxu0 0.0
        %1041 = vmatpush1.msra.mxu0 0.0
        %1042 = vmatprep.subr.mxu0 0.0
        %1043 = vmatpush1.msra.mxu0 0.0
        %1044 = vmatprep.subr.mxu0 0.0
        %1045 = vmatpush1.msra.mxu0 0.0
        %1046 = vmatprep.subr.mxu0 0.0
        %1047 = vmatpush1.msra.mxu0 0.0
        %1048 = vmatprep.subr.mxu0 0.0
        %1049 = vmatpush1.msra.mxu0 0.0
        %1050 = vmatprep.subr.mxu0 0.0
        %1051 = vmatpush1.msra.mxu0 0.0
        %1052 = vmatprep.mubr.f32.mxu0 0.0
        %1053 = vmatmul.mubr.f32.gmra.mrb[0].mxu0 %v986
        %v1054 = vpop.f32.mrb[0].mxu0
        %v1055 = vadd.f32 %v711, %v1054
        %v1056 = vpop.f32.mrb[0].mxu0
        %1057 = vdwg.mxu0
        %v1058 = vsel %vm841, %v686, 0
        %1060 = vmatprep.subr.mxu0 0.0
        %1061 = vmatpush1.msra.mxu0 %v825
        %1062 = vmatprep.subr.mxu0 0.0
        %1063 = vmatpush1.msra.mxu0 0.0
        %1064 = vmatprep.subr.mxu0 0.0
        %1065 = vmatpush1.msra.mxu0 0.0
        %1066 = vmatprep.subr.mxu0 0.0
        %1067 = vmatpush1.msra.mxu0 0.0
        %1068 = vmatprep.subr.mxu0 0.0
        %1069 = vmatpush1.msra.mxu0 0.0
        %1070 = vmatprep.subr.mxu0 0.0
        %1071 = vmatpush1.msra.mxu0 0.0
        %1072 = vmatprep.subr.mxu0 0.0
        %1073 = vmatpush1.msra.mxu0 0.0
        %1074 = vmatprep.subr.mxu0 0.0
        %1075 = vmatpush1.msra.mxu0 0.0
        %1076 = vmatprep.subr.mxu0 0.0
        %1077 = vmatpush1.msra.mxu0 0.0
        %1078 = vmatprep.subr.mxu0 0.0
        %1079 = vmatpush1.msra.mxu0 0.0
        %1080 = vmatprep.subr.mxu0 0.0
        %1081 = vmatpush1.msra.mxu0 0.0
        %1082 = vmatprep.subr.mxu0 0.0
        %1083 = vmatpush1.msra.mxu0 0.0
        %1084 = vmatprep.subr.mxu0 0.0
        %1085 = vmatpush1.msra.mxu0 0.0
        %1086 = vmatprep.subr.mxu0 0.0
        %1087 = vmatpush1.msra.mxu0 0.0
        %1088 = vmatprep.subr.mxu0 0.0
        %1089 = vmatpush1.msra.mxu0 0.0
        %1090 = vmatprep.subr.mxu0 0.0
        %1091 = vmatpush1.msra.mxu0 0.0
        %1092 = vmatprep.subr.mxu0 0.0
        %1093 = vmatpush1.msra.mxu0 0.0
        %1094 = vmatprep.subr.mxu0 0.0
        %1095 = vmatpush1.msra.mxu0 0.0
        %1096 = vmatprep.subr.mxu0 0.0
        %1097 = vmatpush1.msra.mxu0 0.0
        %1098 = vmatprep.subr.mxu0 0.0
        %1099 = vmatpush1.msra.mxu0 0.0
        %1100 = vmatprep.subr.mxu0 0.0
        %1101 = vmatpush1.msra.mxu0 0.0
        %1102 = vmatprep.subr.mxu0 0.0
        %1103 = vmatpush1.msra.mxu0 0.0
        %1104 = vmatprep.subr.mxu0 0.0
        %1105 = vmatpush1.msra.mxu0 0.0
        %1106 = vmatprep.subr.mxu0 0.0
        %1107 = vmatpush1.msra.mxu0 0.0
        %1108 = vmatprep.subr.mxu0 0.0
        %1109 = vmatpush1.msra.mxu0 0.0
        %1110 = vmatprep.subr.mxu0 0.0
        %1111 = vmatpush1.msra.mxu0 0.0
        %1112 = vmatprep.subr.mxu0 0.0
        %1113 = vmatpush1.msra.mxu0 0.0
        %1114 = vmatprep.subr.mxu0 0.0
        %1115 = vmatpush1.msra.mxu0 0.0
        %1116 = vmatprep.subr.mxu0 0.0
        %1117 = vmatpush1.msra.mxu0 0.0
        %1118 = vmatprep.subr.mxu0 0.0
        %1119 = vmatpush1.msra.mxu0 0.0
        %1120 = vmatprep.subr.mxu0 0.0
        %1121 = vmatpush1.msra.mxu0 0.0
        %1122 = vmatprep.subr.mxu0 0.0
        %1123 = vmatpush1.msra.mxu0 0.0
        %1124 = vmatprep.mubr.f32.mxu0 0.0
        %1125 = vmatmul.mubr.f32.gmra.mrb[0].mxu0 %v1058
        %v1126 = vpop.f32.mrb[0].mxu0
        %v1127 = vadd.f32 %v711, %v1126
        %v1128 = vpop.f32.mrb[0].mxu0
        %1129 = vdwg.mxu0
        %v1130 = vsel %vm841, %v911, -inf
        %1131 = vmax.xlane.f32.xlu0 %v1130
        %v1132 = vpop.xlane.xlu0 %1131
        %v1133 = vsel %vm841, %v983, -inf
        %1134 = vmax.xlane.f32.xlu0 %v1133
        %v1135 = vpop.xlane.xlu0 %1134
        %v1136 = vsel %vm841, %v1055, -inf
        %1137 = vmax.xlane.f32.xlu0 %v1136
        %v1138 = vpop.xlane.xlu0 %1137
        %v1139 = vsel %vm841, %v1127, -inf
        %1140 = vmax.xlane.f32.xlu0 %v1139
        %v1141 = vpop.xlane.xlu0 %1140
        %v1142 = vsub.f32 %v911, %v1132
        %v1143 = vsub.f32 %v983, %v1135
        %v1144 = vsub.f32 %v1055, %v1138
        %v1145 = vsub.f32 %v1127, %v1141
        %v1146 = vmul.f32 %v1142, 1.442695
        %v1147 = vpow.pop %v1146
        %v1148 = vmul.f32 %v1143, 1.442695
        %v1149 = vpow.pop %v1148
        %v1150 = vmul.f32 %v1144, 1.442695
        %v1151 = vpow.pop %v1150
        %v1152 = vmul.f32 %v1145, 1.442695
        %v1153 = vpow.pop %v1152
        %v1154 = vsel %vm841, %v1147, 0.0
        %1155 = vadd.xlane.f32.xlu0 %v1154
        %v1156 = vpop.xlane.xlu0 %1155
        %v1157 = vsel %vm841, %v1149, 0.0
        %1158 = vadd.xlane.f32.xlu0 %v1157
        %v1159 = vpop.xlane.xlu0 %1158
        %v1160 = vsel %vm841, %v1151, 0.0
        %1161 = vadd.xlane.f32.xlu0 %v1160
        %v1162 = vpop.xlane.xlu0 %1161
        %v1163 = vsel %vm841, %v1153, 0.0
        %1164 = vadd.xlane.f32.xlu0 %v1163
        %v1165 = vpop.xlane.xlu0 %1164
        %v1166 = vrcp.pop %v1156
        %v1167 = vrcp.pop %v1159
        %v1168 = vrcp.pop %v1162
        %v1169 = vrcp.pop %v1165
        %v1170 = vmul.f32 %v1147, %v1166
        %v1171 = vmul.f32 %v1149, %v1167
        %v1172 = vmul.f32 %v1151, %v1168
        %v1173 = vmul.f32 %v1153, %v1169
        %1174 = vxpose.xlu0.b32.start [1/16] %v675, 128
        %1175 = vxpose.xlu0.b32.cont [2/16] 0.0, 128
        %1176 = vxpose.xlu0.b32.cont [3/16] 0.0, 128
        %1177 = vxpose.xlu0.b32.cont [4/16] 0.0, 128
        %1178 = vxpose.xlu0.b32.cont [5/16] 0.0, 128
        %1179 = vxpose.xlu0.b32.cont [6/16] 0.0, 128
        %1180 = vxpose.xlu0.b32.cont [7/16] 0.0, 128
        %1181 = vxpose.xlu0.b32.cont [8/16] 0.0, 128
        %1182 = vxpose.xlu0.b32.cont [9/16] 0.0, 128
        %1183 = vxpose.xlu0.b32.cont [10/16] 0.0, 128
        %1184 = vxpose.xlu0.b32.cont [11/16] 0.0, 128
        %1185 = vxpose.xlu0.b32.cont [12/16] 0.0, 128
        %1186 = vxpose.xlu0.b32.cont [13/16] 0.0, 128
        %1187 = vxpose.xlu0.b32.cont [14/16] 0.0, 128
        %1188 = vxpose.xlu0.b32.cont [15/16] 0.0, 128
        %1189 = vxpose.xlu0.b32.end [16/16] 0.0, 128
        %v1190 = vpop.trf.xlu0
        %v1191 = vpop.trf.xlu0
        %v1192 = vpop.trf.xlu0
        %v1193 = vpop.trf.xlu0
        %v1194 = vpop.trf.xlu0
        %v1195 = vpop.trf.xlu0
        %v1196 = vpop.trf.xlu0
        %v1197 = vpop.trf.xlu0
        %v1198 = vpop.trf.xlu0
        %v1199 = vpop.trf.xlu0
        %v1200 = vpop.trf.xlu0
        %v1201 = vpop.trf.xlu0
        %v1202 = vpop.trf.xlu0
        %v1203 = vpop.trf.xlu0
        %v1204 = vpop.trf.xlu0
        %v1205 = vpop.trf.xlu0
        %1206 = vxpose.xlu0.b32.start [1/16] %v699, 128
        %1207 = vxpose.xlu0.b32.cont [2/16] 0.0, 128
        %1208 = vxpose.xlu0.b32.cont [3/16] 0.0, 128
        %1209 = vxpose.xlu0.b32.cont [4/16] 0.0, 128
        %1210 = vxpose.xlu0.b32.cont [5/16] 0.0, 128
        %1211 = vxpose.xlu0.b32.cont [6/16] 0.0, 128
        %1212 = vxpose.xlu0.b32.cont [7/16] 0.0, 128
        %1213 = vxpose.xlu0.b32.cont [8/16] 0.0, 128
        %1214 = vxpose.xlu0.b32.cont [9/16] 0.0, 128
        %1215 = vxpose.xlu0.b32.cont [10/16] 0.0, 128
        %1216 = vxpose.xlu0.b32.cont [11/16] 0.0, 128
        %1217 = vxpose.xlu0.b32.cont [12/16] 0.0, 128
        %1218 = vxpose.xlu0.b32.cont [13/16] 0.0, 128
        %1219 = vxpose.xlu0.b32.cont [14/16] 0.0, 128
        %1220 = vxpose.xlu0.b32.cont [15/16] 0.0, 128
        %1221 = vxpose.xlu0.b32.end [16/16] 0.0, 128
        %v1222 = vpop.trf.xlu0
        %v1223 = vpop.trf.xlu0
        %v1224 = vpop.trf.xlu0
        %v1225 = vpop.trf.xlu0
        %v1226 = vpop.trf.xlu0
        %v1227 = vpop.trf.xlu0
        %v1228 = vpop.trf.xlu0
        %v1229 = vpop.trf.xlu0
        %v1230 = vpop.trf.xlu0
        %v1231 = vpop.trf.xlu0
        %v1232 = vpop.trf.xlu0
        %v1233 = vpop.trf.xlu0
        %v1234 = vpop.trf.xlu0
        %v1235 = vpop.trf.xlu0
        %v1236 = vpop.trf.xlu0
        %v1237 = vpop.trf.xlu0
        %1238 = vxpose.xlu0.b32.start [1/16] %v702, 128
        %1239 = vxpose.xlu0.b32.cont [2/16] 0.0, 128
        %1240 = vxpose.xlu0.b32.cont [3/16] 0.0, 128
        %1241 = vxpose.xlu0.b32.cont [4/16] 0.0, 128
        %1242 = vxpose.xlu0.b32.cont [5/16] 0.0, 128
        %1243 = vxpose.xlu0.b32.cont [6/16] 0.0, 128
        %1244 = vxpose.xlu0.b32.cont [7/16] 0.0, 128
        %1245 = vxpose.xlu0.b32.cont [8/16] 0.0, 128
        %1246 = vxpose.xlu0.b32.cont [9/16] 0.0, 128
        %1247 = vxpose.xlu0.b32.cont [10/16] 0.0, 128
        %1248 = vxpose.xlu0.b32.cont [11/16] 0.0, 128
        %1249 = vxpose.xlu0.b32.cont [12/16] 0.0, 128
        %1250 = vxpose.xlu0.b32.cont [13/16] 0.0, 128
        %1251 = vxpose.xlu0.b32.cont [14/16] 0.0, 128
        %1252 = vxpose.xlu0.b32.cont [15/16] 0.0, 128
        %1253 = vxpose.xlu0.b32.end [16/16] 0.0, 128
        %v1254 = vpop.trf.xlu0
        %v1255 = vpop.trf.xlu0
        %v1256 = vpop.trf.xlu0
        %v1257 = vpop.trf.xlu0
        %v1258 = vpop.trf.xlu0
        %v1259 = vpop.trf.xlu0
        %v1260 = vpop.trf.xlu0
        %v1261 = vpop.trf.xlu0
        %v1262 = vpop.trf.xlu0
        %v1263 = vpop.trf.xlu0
        %v1264 = vpop.trf.xlu0
        %v1265 = vpop.trf.xlu0
        %v1266 = vpop.trf.xlu0
        %v1267 = vpop.trf.xlu0
        %v1268 = vpop.trf.xlu0
        %v1269 = vpop.trf.xlu0
        %1270 = vxpose.xlu0.b32.start [1/16] %v705, 128
        %1271 = vxpose.xlu0.b32.cont [2/16] 0.0, 128
        %1272 = vxpose.xlu0.b32.cont [3/16] 0.0, 128
        %1273 = vxpose.xlu0.b32.cont [4/16] 0.0, 128
        %1274 = vxpose.xlu0.b32.cont [5/16] 0.0, 128
        %1275 = vxpose.xlu0.b32.cont [6/16] 0.0, 128
        %1276 = vxpose.xlu0.b32.cont [7/16] 0.0, 128
        %1277 = vxpose.xlu0.b32.cont [8/16] 0.0, 128
        %1278 = vxpose.xlu0.b32.cont [9/16] 0.0, 128
        %1279 = vxpose.xlu0.b32.cont [10/16] 0.0, 128
        %1280 = vxpose.xlu0.b32.cont [11/16] 0.0, 128
        %1281 = vxpose.xlu0.b32.cont [12/16] 0.0, 128
        %1282 = vxpose.xlu0.b32.cont [13/16] 0.0, 128
        %1283 = vxpose.xlu0.b32.cont [14/16] 0.0, 128
        %1284 = vxpose.xlu0.b32.cont [15/16] 0.0, 128
        %1285 = vxpose.xlu0.b32.end [16/16] 0.0, 128
        %v1286 = vpop.trf.xlu0
        %v1287 = vpop.trf.xlu0
        %v1288 = vpop.trf.xlu0
        %v1289 = vpop.trf.xlu0
        %v1290 = vpop.trf.xlu0
        %v1291 = vpop.trf.xlu0
        %v1292 = vpop.trf.xlu0
        %v1293 = vpop.trf.xlu0
        %v1294 = vpop.trf.xlu0
        %v1295 = vpop.trf.xlu0
        %v1296 = vpop.trf.xlu0
        %v1297 = vpop.trf.xlu0
        %v1298 = vpop.trf.xlu0
        %v1299 = vpop.trf.xlu0
        %v1300 = vpop.trf.xlu0
        %v1301 = vpop.trf.xlu0
        %v1303 = vsel %vm841, %v1190, 0
        %v1306 = vsel %vm841, %v1170, 0
        %1308 = vmatprep.subr.mxu0 0.0
        %1309 = vmatpush1.xpose.msra.mxu0 %v1306
        %1310 = vmatprep.subr.mxu0 0.0
        %1311 = vmatpush1.xpose.msra.mxu0 0.0
        %1312 = vmatprep.subr.mxu0 0.0
        %1313 = vmatpush1.xpose.msra.mxu0 0.0
        %1314 = vmatprep.subr.mxu0 0.0
        %1315 = vmatpush1.xpose.msra.mxu0 0.0
        %1316 = vmatprep.subr.mxu0 0.0
        %1317 = vmatpush1.xpose.msra.mxu0 0.0
        %1318 = vmatprep.subr.mxu0 0.0
        %1319 = vmatpush1.xpose.msra.mxu0 0.0
        %1320 = vmatprep.subr.mxu0 0.0
        %1321 = vmatpush1.xpose.msra.mxu0 0.0
        %1322 = vmatprep.subr.mxu0 0.0
        %1323 = vmatpush1.xpose.msra.mxu0 0.0
        %1324 = vmatprep.subr.mxu0 0.0
        %1325 = vmatpush1.xpose.msra.mxu0 0.0
        %1326 = vmatprep.subr.mxu0 0.0
        %1327 = vmatpush1.xpose.msra.mxu0 0.0
        %1328 = vmatprep.subr.mxu0 0.0
        %1329 = vmatpush1.xpose.msra.mxu0 0.0
        %1330 = vmatprep.subr.mxu0 0.0
        %1331 = vmatpush1.xpose.msra.mxu0 0.0
        %1332 = vmatprep.subr.mxu0 0.0
        %1333 = vmatpush1.xpose.msra.mxu0 0.0
        %1334 = vmatprep.subr.mxu0 0.0
        %1335 = vmatpush1.xpose.msra.mxu0 0.0
        %1336 = vmatprep.subr.mxu0 0.0
        %1337 = vmatpush1.xpose.msra.mxu0 0.0
        %1338 = vmatprep.subr.mxu0 0.0
        %1339 = vmatpush1.xpose.msra.mxu0 0.0
        %1340 = vmatprep.subr.mxu0 0.0
        %1341 = vmatpush1.xpose.msra.mxu0 0.0
        %1342 = vmatprep.subr.mxu0 0.0
        %1343 = vmatpush1.xpose.msra.mxu0 0.0
        %1344 = vmatprep.subr.mxu0 0.0
        %1345 = vmatpush1.xpose.msra.mxu0 0.0
        %1346 = vmatprep.subr.mxu0 0.0
        %1347 = vmatpush1.xpose.msra.mxu0 0.0
        %1348 = vmatprep.subr.mxu0 0.0
        %1349 = vmatpush1.xpose.msra.mxu0 0.0
        %1350 = vmatprep.subr.mxu0 0.0
        %1351 = vmatpush1.xpose.msra.mxu0 0.0
        %1352 = vmatprep.subr.mxu0 0.0
        %1353 = vmatpush1.xpose.msra.mxu0 0.0
        %1354 = vmatprep.subr.mxu0 0.0
        %1355 = vmatpush1.xpose.msra.mxu0 0.0
        %1356 = vmatprep.subr.mxu0 0.0
        %1357 = vmatpush1.xpose.msra.mxu0 0.0
        %1358 = vmatprep.subr.mxu0 0.0
        %1359 = vmatpush1.xpose.msra.mxu0 0.0
        %1360 = vmatprep.subr.mxu0 0.0
        %1361 = vmatpush1.xpose.msra.mxu0 0.0
        %1362 = vmatprep.subr.mxu0 0.0
        %1363 = vmatpush1.xpose.msra.mxu0 0.0
        %1364 = vmatprep.subr.mxu0 0.0
        %1365 = vmatpush1.xpose.msra.mxu0 0.0
        %1366 = vmatprep.subr.mxu0 0.0
        %1367 = vmatpush1.xpose.msra.mxu0 0.0
        %1368 = vmatprep.subr.mxu0 0.0
        %1369 = vmatpush1.xpose.msra.mxu0 0.0
        %1370 = vmatprep.subr.mxu0 0.0
        %1371 = vmatpush1.xpose.msra.mxu0 0.0
        %1372 = vmatprep.mubr.f32.mxu0 0.0
        %1373 = vmatmul.mubr.f32.gmra.mrb[0].mxu0 %v1303
        %v1374 = vpop.f32.mrb[0].mxu0
        %v1375 = vadd.f32 0.0, %v1374
        %v1376 = vpop.f32.mrb[0].mxu0
        %1377 = vdwg.mxu0
        %v1379 = vsel %vm841, %v1222, 0
        %v1382 = vsel %vm841, %v1171, 0
        %1384 = vmatprep.subr.mxu0 0.0
        %1385 = vmatpush1.xpose.msra.mxu0 %v1382
        %1386 = vmatprep.subr.mxu0 0.0
        %1387 = vmatpush1.xpose.msra.mxu0 0.0
        %1388 = vmatprep.subr.mxu0 0.0
        %1389 = vmatpush1.xpose.msra.mxu0 0.0
        %1390 = vmatprep.subr.mxu0 0.0
        %1391 = vmatpush1.xpose.msra.mxu0 0.0
        %1392 = vmatprep.subr.mxu0 0.0
        %1393 = vmatpush1.xpose.msra.mxu0 0.0
        %1394 = vmatprep.subr.mxu0 0.0
        %1395 = vmatpush1.xpose.msra.mxu0 0.0
        %1396 = vmatprep.subr.mxu0 0.0
        %1397 = vmatpush1.xpose.msra.mxu0 0.0
        %1398 = vmatprep.subr.mxu0 0.0
        %1399 = vmatpush1.xpose.msra.mxu0 0.0
        %1400 = vmatprep.subr.mxu0 0.0
        %1401 = vmatpush1.xpose.msra.mxu0 0.0
        %1402 = vmatprep.subr.mxu0 0.0
        %1403 = vmatpush1.xpose.msra.mxu0 0.0
        %1404 = vmatprep.subr.mxu0 0.0
        %1405 = vmatpush1.xpose.msra.mxu0 0.0
        %1406 = vmatprep.subr.mxu0 0.0
        %1407 = vmatpush1.xpose.msra.mxu0 0.0
        %1408 = vmatprep.subr.mxu0 0.0
        %1409 = vmatpush1.xpose.msra.mxu0 0.0
        %1410 = vmatprep.subr.mxu0 0.0
        %1411 = vmatpush1.xpose.msra.mxu0 0.0
        %1412 = vmatprep.subr.mxu0 0.0
        %1413 = vmatpush1.xpose.msra.mxu0 0.0
        %1414 = vmatprep.subr.mxu0 0.0
        %1415 = vmatpush1.xpose.msra.mxu0 0.0
        %1416 = vmatprep.subr.mxu0 0.0
        %1417 = vmatpush1.xpose.msra.mxu0 0.0
        %1418 = vmatprep.subr.mxu0 0.0
        %1419 = vmatpush1.xpose.msra.mxu0 0.0
        %1420 = vmatprep.subr.mxu0 0.0
        %1421 = vmatpush1.xpose.msra.mxu0 0.0
        %1422 = vmatprep.subr.mxu0 0.0
        %1423 = vmatpush1.xpose.msra.mxu0 0.0
        %1424 = vmatprep.subr.mxu0 0.0
        %1425 = vmatpush1.xpose.msra.mxu0 0.0
        %1426 = vmatprep.subr.mxu0 0.0
        %1427 = vmatpush1.xpose.msra.mxu0 0.0
        %1428 = vmatprep.subr.mxu0 0.0
        %1429 = vmatpush1.xpose.msra.mxu0 0.0
        %1430 = vmatprep.subr.mxu0 0.0
        %1431 = vmatpush1.xpose.msra.mxu0 0.0
        %1432 = vmatprep.subr.mxu0 0.0
        %1433 = vmatpush1.xpose.msra.mxu0 0.0
        %1434 = vmatprep.subr.mxu0 0.0
        %1435 = vmatpush1.xpose.msra.mxu0 0.0
        %1436 = vmatprep.subr.mxu0 0.0
        %1437 = vmatpush1.xpose.msra.mxu0 0.0
        %1438 = vmatprep.subr.mxu0 0.0
        %1439 = vmatpush1.xpose.msra.mxu0 0.0
        %1440 = vmatprep.subr.mxu0 0.0
        %1441 = vmatpush1.xpose.msra.mxu0 0.0
        %1442 = vmatprep.subr.mxu0 0.0
        %1443 = vmatpush1.xpose.msra.mxu0 0.0
        %1444 = vmatprep.subr.mxu0 0.0
        %1445 = vmatpush1.xpose.msra.mxu0 0.0
        %1446 = vmatprep.subr.mxu0 0.0
        %1447 = vmatpush1.xpose.msra.mxu0 0.0
        %1448 = vmatprep.mubr.f32.mxu0 0.0
        %1449 = vmatmul.mubr.f32.gmra.mrb[0].mxu0 %v1379
        %v1450 = vpop.f32.mrb[0].mxu0
        %v1451 = vadd.f32 0.0, %v1450
        %v1452 = vpop.f32.mrb[0].mxu0
        %1453 = vdwg.mxu0
        %v1455 = vsel %vm841, %v1254, 0
        %v1458 = vsel %vm841, %v1172, 0
        %1460 = vmatprep.subr.mxu0 0.0
        %1461 = vmatpush1.xpose.msra.mxu0 %v1458
        %1462 = vmatprep.subr.mxu0 0.0
        %1463 = vmatpush1.xpose.msra.mxu0 0.0
        %1464 = vmatprep.subr.mxu0 0.0
        %1465 = vmatpush1.xpose.msra.mxu0 0.0
        %1466 = vmatprep.subr.mxu0 0.0
        %1467 = vmatpush1.xpose.msra.mxu0 0.0
        %1468 = vmatprep.subr.mxu0 0.0
        %1469 = vmatpush1.xpose.msra.mxu0 0.0
        %1470 = vmatprep.subr.mxu0 0.0
        %1471 = vmatpush1.xpose.msra.mxu0 0.0
        %1472 = vmatprep.subr.mxu0 0.0
        %1473 = vmatpush1.xpose.msra.mxu0 0.0
        %1474 = vmatprep.subr.mxu0 0.0
        %1475 = vmatpush1.xpose.msra.mxu0 0.0
        %1476 = vmatprep.subr.mxu0 0.0
        %1477 = vmatpush1.xpose.msra.mxu0 0.0
        %1478 = vmatprep.subr.mxu0 0.0
        %1479 = vmatpush1.xpose.msra.mxu0 0.0
        %1480 = vmatprep.subr.mxu0 0.0
        %1481 = vmatpush1.xpose.msra.mxu0 0.0
        %1482 = vmatprep.subr.mxu0 0.0
        %1483 = vmatpush1.xpose.msra.mxu0 0.0
        %1484 = vmatprep.subr.mxu0 0.0
        %1485 = vmatpush1.xpose.msra.mxu0 0.0
        %1486 = vmatprep.subr.mxu0 0.0
        %1487 = vmatpush1.xpose.msra.mxu0 0.0
        %1488 = vmatprep.subr.mxu0 0.0
        %1489 = vmatpush1.xpose.msra.mxu0 0.0
        %1490 = vmatprep.subr.mxu0 0.0
        %1491 = vmatpush1.xpose.msra.mxu0 0.0
        %1492 = vmatprep.subr.mxu0 0.0
        %1493 = vmatpush1.xpose.msra.mxu0 0.0
        %1494 = vmatprep.subr.mxu0 0.0
        %1495 = vmatpush1.xpose.msra.mxu0 0.0
        %1496 = vmatprep.subr.mxu0 0.0
        %1497 = vmatpush1.xpose.msra.mxu0 0.0
        %1498 = vmatprep.subr.mxu0 0.0
        %1499 = vmatpush1.xpose.msra.mxu0 0.0
        %1500 = vmatprep.subr.mxu0 0.0
        %1501 = vmatpush1.xpose.msra.mxu0 0.0
        %1502 = vmatprep.subr.mxu0 0.0
        %1503 = vmatpush1.xpose.msra.mxu0 0.0
        %1504 = vmatprep.subr.mxu0 0.0
        %1505 = vmatpush1.xpose.msra.mxu0 0.0
        %1506 = vmatprep.subr.mxu0 0.0
        %1507 = vmatpush1.xpose.msra.mxu0 0.0
        %1508 = vmatprep.subr.mxu0 0.0
        %1509 = vmatpush1.xpose.msra.mxu0 0.0
        %1510 = vmatprep.subr.mxu0 0.0
        %1511 = vmatpush1.xpose.msra.mxu0 0.0
        %1512 = vmatprep.subr.mxu0 0.0
        %1513 = vmatpush1.xpose.msra.mxu0 0.0
        %1514 = vmatprep.subr.mxu0 0.0
        %1515 = vmatpush1.xpose.msra.mxu0 0.0
        %1516 = vmatprep.subr.mxu0 0.0
        %1517 = vmatpush1.xpose.msra.mxu0 0.0
        %1518 = vmatprep.subr.mxu0 0.0
        %1519 = vmatpush1.xpose.msra.mxu0 0.0
        %1520 = vmatprep.subr.mxu0 0.0
        %1521 = vmatpush1.xpose.msra.mxu0 0.0
        %1522 = vmatprep.subr.mxu0 0.0
        %1523 = vmatpush1.xpose.msra.mxu0 0.0
        %1524 = vmatprep.mubr.f32.mxu0 0.0
        %1525 = vmatmul.mubr.f32.gmra.mrb[0].mxu0 %v1455
        %v1526 = vpop.f32.mrb[0].mxu0
        %v1527 = vadd.f32 0.0, %v1526
        %v1528 = vpop.f32.mrb[0].mxu0
        %1529 = vdwg.mxu0
        %v1531 = vsel %vm841, %v1286, 0
        %v1534 = vsel %vm841, %v1173, 0
        %1536 = vmatprep.subr.mxu0 0.0
        %1537 = vmatpush1.xpose.msra.mxu0 %v1534
        %1538 = vmatprep.subr.mxu0 0.0
        %1539 = vmatpush1.xpose.msra.mxu0 0.0
        %1540 = vmatprep.subr.mxu0 0.0
        %1541 = vmatpush1.xpose.msra.mxu0 0.0
        %1542 = vmatprep.subr.mxu0 0.0
        %1543 = vmatpush1.xpose.msra.mxu0 0.0
        %1544 = vmatprep.subr.mxu0 0.0
        %1545 = vmatpush1.xpose.msra.mxu0 0.0
        %1546 = vmatprep.subr.mxu0 0.0
        %1547 = vmatpush1.xpose.msra.mxu0 0.0
        %1548 = vmatprep.subr.mxu0 0.0
        %1549 = vmatpush1.xpose.msra.mxu0 0.0
        %1550 = vmatprep.subr.mxu0 0.0
        %1551 = vmatpush1.xpose.msra.mxu0 0.0
        %1552 = vmatprep.subr.mxu0 0.0
        %1553 = vmatpush1.xpose.msra.mxu0 0.0
        %1554 = vmatprep.subr.mxu0 0.0
        %1555 = vmatpush1.xpose.msra.mxu0 0.0
        %1556 = vmatprep.subr.mxu0 0.0
        %1557 = vmatpush1.xpose.msra.mxu0 0.0
        %1558 = vmatprep.subr.mxu0 0.0
        %1559 = vmatpush1.xpose.msra.mxu0 0.0
        %1560 = vmatprep.subr.mxu0 0.0
        %1561 = vmatpush1.xpose.msra.mxu0 0.0
        %1562 = vmatprep.subr.mxu0 0.0
        %1563 = vmatpush1.xpose.msra.mxu0 0.0
        %1564 = vmatprep.subr.mxu0 0.0
        %1565 = vmatpush1.xpose.msra.mxu0 0.0
        %1566 = vmatprep.subr.mxu0 0.0
        %1567 = vmatpush1.xpose.msra.mxu0 0.0
        %1568 = vmatprep.subr.mxu0 0.0
        %1569 = vmatpush1.xpose.msra.mxu0 0.0
        %1570 = vmatprep.subr.mxu0 0.0
        %1571 = vmatpush1.xpose.msra.mxu0 0.0
        %1572 = vmatprep.subr.mxu0 0.0
        %1573 = vmatpush1.xpose.msra.mxu0 0.0
        %1574 = vmatprep.subr.mxu0 0.0
        %1575 = vmatpush1.xpose.msra.mxu0 0.0
        %1576 = vmatprep.subr.mxu0 0.0
        %1577 = vmatpush1.xpose.msra.mxu0 0.0
        %1578 = vmatprep.subr.mxu0 0.0
        %1579 = vmatpush1.xpose.msra.mxu0 0.0
        %1580 = vmatprep.subr.mxu0 0.0
        %1581 = vmatpush1.xpose.msra.mxu0 0.0
        %1582 = vmatprep.subr.mxu0 0.0
        %1583 = vmatpush1.xpose.msra.mxu0 0.0
        %1584 = vmatprep.subr.mxu0 0.0
        %1585 = vmatpush1.xpose.msra.mxu0 0.0
        %1586 = vmatprep.subr.mxu0 0.0
        %1587 = vmatpush1.xpose.msra.mxu0 0.0
        %1588 = vmatprep.subr.mxu0 0.0
        %1589 = vmatpush1.xpose.msra.mxu0 0.0
        %1590 = vmatprep.subr.mxu0 0.0
        %1591 = vmatpush1.xpose.msra.mxu0 0.0
        %1592 = vmatprep.subr.mxu0 0.0
        %1593 = vmatpush1.xpose.msra.mxu0 0.0
        %1594 = vmatprep.subr.mxu0 0.0
        %1595 = vmatpush1.xpose.msra.mxu0 0.0
        %1596 = vmatprep.subr.mxu0 0.0
        %1597 = vmatpush1.xpose.msra.mxu0 0.0
        %1598 = vmatprep.subr.mxu0 0.0
        %1599 = vmatpush1.xpose.msra.mxu0 0.0
        %1600 = vmatprep.mubr.f32.mxu0 0.0
        %1601 = vmatmul.mubr.f32.gmra.mrb[0].mxu0 %v1531
        %v1602 = vpop.f32.mrb[0].mxu0
        %v1603 = vadd.f32 0.0, %v1602
        %v1604 = vpop.f32.mrb[0].mxu0
        %1605 = vdwg.mxu0
        %1606 = vxpose.xlu0.b32.start [1/16] %v1375, 128
        %1607 = vxpose.xlu0.b32.cont [2/16] 0.0, 128
        %1608 = vxpose.xlu0.b32.cont [3/16] 0.0, 128
        %1609 = vxpose.xlu0.b32.cont [4/16] 0.0, 128
        %1610 = vxpose.xlu0.b32.cont [5/16] 0.0, 128
        %1611 = vxpose.xlu0.b32.cont [6/16] 0.0, 128
        %1612 = vxpose.xlu0.b32.cont [7/16] 0.0, 128
        %1613 = vxpose.xlu0.b32.cont [8/16] 0.0, 128
        %1614 = vxpose.xlu0.b32.cont [9/16] 0.0, 128
        %1615 = vxpose.xlu0.b32.cont [10/16] 0.0, 128
        %1616 = vxpose.xlu0.b32.cont [11/16] 0.0, 128
        %1617 = vxpose.xlu0.b32.cont [12/16] 0.0, 128
        %1618 = vxpose.xlu0.b32.cont [13/16] 0.0, 128
        %1619 = vxpose.xlu0.b32.cont [14/16] 0.0, 128
        %1620 = vxpose.xlu0.b32.cont [15/16] 0.0, 128
        %1621 = vxpose.xlu0.b32.end [16/16] 0.0, 128
        %v1622 = vpop.trf.xlu0
        %v1623 = vpop.trf.xlu0
        %v1624 = vpop.trf.xlu0
        %v1625 = vpop.trf.xlu0
        %v1626 = vpop.trf.xlu0
        %v1627 = vpop.trf.xlu0
        %v1628 = vpop.trf.xlu0
        %v1629 = vpop.trf.xlu0
        %v1630 = vpop.trf.xlu0
        %v1631 = vpop.trf.xlu0
        %v1632 = vpop.trf.xlu0
        %v1633 = vpop.trf.xlu0
        %v1634 = vpop.trf.xlu0
        %v1635 = vpop.trf.xlu0
        %v1636 = vpop.trf.xlu0
        %v1637 = vpop.trf.xlu0
        %1638 = vxpose.xlu0.b32.start [1/16] %v1451, 128
        %1639 = vxpose.xlu0.b32.cont [2/16] 0.0, 128
        %1640 = vxpose.xlu0.b32.cont [3/16] 0.0, 128
        %1641 = vxpose.xlu0.b32.cont [4/16] 0.0, 128
        %1642 = vxpose.xlu0.b32.cont [5/16] 0.0, 128
        %1643 = vxpose.xlu0.b32.cont [6/16] 0.0, 128
        %1644 = vxpose.xlu0.b32.cont [7/16] 0.0, 128
        %1645 = vxpose.xlu0.b32.cont [8/16] 0.0, 128
        %1646 = vxpose.xlu0.b32.cont [9/16] 0.0, 128
        %1647 = vxpose.xlu0.b32.cont [10/16] 0.0, 128
        %1648 = vxpose.xlu0.b32.cont [11/16] 0.0, 128
        %1649 = vxpose.xlu0.b32.cont [12/16] 0.0, 128
        %1650 = vxpose.xlu0.b32.cont [13/16] 0.0, 128
        %1651 = vxpose.xlu0.b32.cont [14/16] 0.0, 128
        %1652 = vxpose.xlu0.b32.cont [15/16] 0.0, 128
        %1653 = vxpose.xlu0.b32.end [16/16] 0.0, 128
        %v1654 = vpop.trf.xlu0
        %v1655 = vpop.trf.xlu0
        %v1656 = vpop.trf.xlu0
        %v1657 = vpop.trf.xlu0
        %v1658 = vpop.trf.xlu0
        %v1659 = vpop.trf.xlu0
        %v1660 = vpop.trf.xlu0
        %v1661 = vpop.trf.xlu0
        %v1662 = vpop.trf.xlu0
        %v1663 = vpop.trf.xlu0
        %v1664 = vpop.trf.xlu0
        %v1665 = vpop.trf.xlu0
        %v1666 = vpop.trf.xlu0
        %v1667 = vpop.trf.xlu0
        %v1668 = vpop.trf.xlu0
        %v1669 = vpop.trf.xlu0
        %1670 = vxpose.xlu0.b32.start [1/16] %v1527, 128
        %1671 = vxpose.xlu0.b32.cont [2/16] 0.0, 128
        %1672 = vxpose.xlu0.b32.cont [3/16] 0.0, 128
        %1673 = vxpose.xlu0.b32.cont [4/16] 0.0, 128
        %1674 = vxpose.xlu0.b32.cont [5/16] 0.0, 128
        %1675 = vxpose.xlu0.b32.cont [6/16] 0.0, 128
        %1676 = vxpose.xlu0.b32.cont [7/16] 0.0, 128
        %1677 = vxpose.xlu0.b32.cont [8/16] 0.0, 128
        %1678 = vxpose.xlu0.b32.cont [9/16] 0.0, 128
        %1679 = vxpose.xlu0.b32.cont [10/16] 0.0, 128
        %1680 = vxpose.xlu0.b32.cont [11/16] 0.0, 128
        %1681 = vxpose.xlu0.b32.cont [12/16] 0.0, 128
        %1682 = vxpose.xlu0.b32.cont [13/16] 0.0, 128
        %1683 = vxpose.xlu0.b32.cont [14/16] 0.0, 128
        %1684 = vxpose.xlu0.b32.cont [15/16] 0.0, 128
        %1685 = vxpose.xlu0.b32.end [16/16] 0.0, 128
        %v1686 = vpop.trf.xlu0
        %v1687 = vpop.trf.xlu0
        %v1688 = vpop.trf.xlu0
        %v1689 = vpop.trf.xlu0
        %v1690 = vpop.trf.xlu0
        %v1691 = vpop.trf.xlu0
        %v1692 = vpop.trf.xlu0
        %v1693 = vpop.trf.xlu0
        %v1694 = vpop.trf.xlu0
        %v1695 = vpop.trf.xlu0
        %v1696 = vpop.trf.xlu0
        %v1697 = vpop.trf.xlu0
        %v1698 = vpop.trf.xlu0
        %v1699 = vpop.trf.xlu0
        %v1700 = vpop.trf.xlu0
        %v1701 = vpop.trf.xlu0
        %1702 = vxpose.xlu0.b32.start [1/16] %v1603, 128
        %1703 = vxpose.xlu0.b32.cont [2/16] 0.0, 128
        %1704 = vxpose.xlu0.b32.cont [3/16] 0.0, 128
        %1705 = vxpose.xlu0.b32.cont [4/16] 0.0, 128
        %1706 = vxpose.xlu0.b32.cont [5/16] 0.0, 128
        %1707 = vxpose.xlu0.b32.cont [6/16] 0.0, 128
        %1708 = vxpose.xlu0.b32.cont [7/16] 0.0, 128
        %1709 = vxpose.xlu0.b32.cont [8/16] 0.0, 128
        %1710 = vxpose.xlu0.b32.cont [9/16] 0.0, 128
        %1711 = vxpose.xlu0.b32.cont [10/16] 0.0, 128
        %1712 = vxpose.xlu0.b32.cont [11/16] 0.0, 128
        %1713 = vxpose.xlu0.b32.cont [12/16] 0.0, 128
        %1714 = vxpose.xlu0.b32.cont [13/16] 0.0, 128
        %1715 = vxpose.xlu0.b32.cont [14/16] 0.0, 128
        %1716 = vxpose.xlu0.b32.cont [15/16] 0.0, 128
        %1717 = vxpose.xlu0.b32.end [16/16] 0.0, 128
        %v1718 = vpop.trf.xlu0
        %v1719 = vpop.trf.xlu0
        %v1720 = vpop.trf.xlu0
        %v1721 = vpop.trf.xlu0
        %v1722 = vpop.trf.xlu0
        %v1723 = vpop.trf.xlu0
        %v1724 = vpop.trf.xlu0
        %v1725 = vpop.trf.xlu0
        %v1726 = vpop.trf.xlu0
        %v1727 = vpop.trf.xlu0
        %v1728 = vpop.trf.xlu0
        %v1729 = vpop.trf.xlu0
        %v1730 = vpop.trf.xlu0
        %v1731 = vpop.trf.xlu0
        %v1732 = vpop.trf.xlu0
        %v1733 = vpop.trf.xlu0
        %v1734 = vcombine.low %v1622, %v1686
        %v1735 = vcombine.high %v1622, %v1686
        %v1737 = vunpack.c.l.s4 1983009808
        %v1738 = vunpack.c.0.s8 %v1737
        %v1739 = vlaneseq
        %v1740 = vshrl.u32 %v1739, 7
        %v1741 = vsub.s32 %v1738, %v1740
        %v1742 = vrot.slane %v1734, %v1741
        %v1744 = vunpack.c.l.s4 1983009808
        %v1745 = vunpack.c.0.s8 %v1744
        %v1746 = vlaneseq
        %v1747 = vshrl.u32 %v1746, 7
        %v1748 = vsub.s32 %v1745, %v1747
        %v1749 = vrot.slane %v1735, %v1748
        %v1750 = vcombine.low %v1654, %v1718
        %v1751 = vcombine.high %v1654, %v1718
        %v1753 = vunpack.c.l.s4 1983009808
        %v1754 = vunpack.c.0.s8 %v1753
        %v1755 = vlaneseq
        %v1756 = vshrl.u32 %v1755, 7
        %v1757 = vsub.s32 %v1754, %v1756
        %v1758 = vrot.slane %v1750, %v1757
        %v1760 = vunpack.c.l.s4 1983009808
        %v1761 = vunpack.c.0.s8 %v1760
        %v1762 = vlaneseq
        %v1763 = vshrl.u32 %v1762, 7
        %v1764 = vsub.s32 %v1761, %v1763
        %v1765 = vrot.slane %v1751, %v1764
        %v1766 = vcombine.low %v1742, %v1758
        %v1767 = vcombine.high %v1742, %v1758
        %v1769 = vunpack.c.l.s4 1934713408
        %v1770 = vunpack.c.0.s8 %v1769
        %v1771 = vlaneseq
        %v1772 = vshrl.u32 %v1771, 7
        %v1773 = vsub.s32 %v1770, %v1772
        %v1774 = vrot.slane %v1766, %v1773
        %v1776 = vunpack.c.l.s4 1934713408
        %v1777 = vunpack.c.0.s8 %v1776
        %v1778 = vlaneseq
        %v1779 = vshrl.u32 %v1778, 7
        %v1780 = vsub.s32 %v1777, %v1779
        %v1781 = vrot.slane %v1767, %v1780
        %v1782 = vcombine.low %v1749, %v1765
        %v1783 = vcombine.high %v1749, %v1765
        %v1785 = vunpack.c.l.s4 1934713408
        %v1786 = vunpack.c.0.s8 %v1785
        %v1787 = vlaneseq
        %v1788 = vshrl.u32 %v1787, 7
        %v1789 = vsub.s32 %v1786, %v1788
        %v1790 = vrot.slane %v1782, %v1789
        %v1792 = vunpack.c.l.s4 1934713408
        %v1793 = vunpack.c.0.s8 %v1792
        %v1794 = vlaneseq
        %v1795 = vshrl.u32 %v1794, 7
        %v1796 = vsub.s32 %v1793, %v1795
        %v1797 = vrot.slane %v1783, %v1796
        %v1798 = vcombine.high %v1774, 0.0
        %v1799 = vcombine.high %v1781, 0.0
        %v1800 = vcombine.high %v1790, 0.0
        %v1801 = vcombine.high %v1797, 0.0
        %v1802 = vcombine.low %v1774, %v1781
        %v1804 = vunpack.c.l.s4 1983009808
        %v1805 = vunpack.c.0.s8 %v1804
        %v1806 = vlaneseq
        %v1807 = vshrl.u32 %v1806, 7
        %v1808 = vsub.s32 %v1805, %v1807
        %v1809 = vrot.slane %v1802, %v1808
        %v1810 = vcombine.low %v1798, %v1799
        %v1812 = vunpack.c.l.s4 1983009808
        %v1813 = vunpack.c.0.s8 %v1812
        %v1814 = vlaneseq
        %v1815 = vshrl.u32 %v1814, 7
        %v1816 = vsub.s32 %v1813, %v1815
        %v1817 = vrot.slane %v1810, %v1816
        %v1818 = vcombine.low %v1790, %v1797
        %v1820 = vunpack.c.l.s4 1983009808
        %v1821 = vunpack.c.0.s8 %v1820
        %v1822 = vlaneseq
        %v1823 = vshrl.u32 %v1822, 7
        %v1824 = vsub.s32 %v1821, %v1823
        %v1825 = vrot.slane %v1818, %v1824
        %v1826 = vcombine.low %v1800, %v1801
        %v1828 = vunpack.c.l.s4 1983009808
        %v1829 = vunpack.c.0.s8 %v1828
        %v1830 = vlaneseq
        %v1831 = vshrl.u32 %v1830, 7
        %v1832 = vsub.s32 %v1829, %v1831
        %v1833 = vrot.slane %v1826, %v1832
        %v1834 = vcombine.low %v1809, %v1817
        %v1835 = vcombine.high %v1809, %v1817
        %v1837 = vunpack.c.l.s4 1934713408
        %v1838 = vunpack.c.0.s8 %v1837
        %v1839 = vlaneseq
        %v1840 = vshrl.u32 %v1839, 7
        %v1841 = vsub.s32 %v1838, %v1840
        %v1842 = vrot.slane %v1834, %v1841
        %v1844 = vunpack.c.l.s4 1934713408
        %v1845 = vunpack.c.0.s8 %v1844
        %v1846 = vlaneseq
        %v1847 = vshrl.u32 %v1846, 7
        %v1848 = vsub.s32 %v1845, %v1847
        %v1849 = vrot.slane %v1835, %v1848
        %v1850 = vcombine.low %v1825, %v1833
        %v1851 = vcombine.high %v1825, %v1833
        %v1853 = vunpack.c.l.s4 1934713408
        %v1854 = vunpack.c.0.s8 %v1853
        %v1855 = vlaneseq
        %v1856 = vshrl.u32 %v1855, 7
        %v1857 = vsub.s32 %v1854, %v1856
        %v1858 = vrot.slane %v1850, %v1857
        %v1860 = vunpack.c.l.s4 1934713408
        %v1861 = vunpack.c.0.s8 %v1860
        %v1862 = vlaneseq
        %v1863 = vshrl.u32 %v1862, 7
        %v1864 = vsub.s32 %v1861, %v1863
        %v1865 = vrot.slane %v1851, %v1864
        %v1866 = vcombine.low %v1842, %v1858
        %v1867 = vcombine.high %v1842, %v1858
        %v1868 = vcombine.low %v1849, %v1865
        %v1869 = vcombine.high %v1849, %v1865
        %1871 = vrot.lane.b32.xlu0 %v1867, 8
        %v1872 = vpop.permute.xlu0 %1871
        %1875 = vrot.lane.b32.xlu0 %v1868, 16
        %v1876 = vpop.permute.xlu0 %1875
        %1879 = vrot.lane.b32.xlu0 %v1869, 24
        %v1880 = vpop.permute.xlu0 %1879
        %v1882 = vsel %vm841, %v1866, %v1872
        %vm1883 = vcmask 130048
        %v1884 = vsel %vm1883, %v1882, %v1876
        %vm1885 = vcmask 195584
        %v1886 = vsel %vm1885, %v1884, %v1880
        %v1887 = vpack.c.bf16 %v1886, %v1886
        %v1888 = vld [vmem:[%s462] sm:$0xf]
        %v1889 = vld [vmem:[%s462 + $0x4] sm:$0xf]
        %v1890 = vld [vmem:[%s462 + $0x8] sm:$0xf]
        %v1891 = vld [vmem:[%s462 + $0xc] sm:$0xf]
        %v1892 = vlaneseq
        %v1893 = vshrl.u32 %v1892, 7
        %v1894 = vsub.s32 3, %v1893
        %v1895 = vrot.slane %v491, %v1894
        %v1900 = vunpack.c.l.b16 %v1888
        %v1901 = vunpack.c.l.b16 %v1889
        %v1902 = vunpack.c.l.b16 %v1890
        %v1903 = vunpack.c.l.b16 %v1891
        %v1904 = vpack.c.b16 %v1901, %v1900
        %v1905 = vpack.c.b16 %v1903, %v1902
        %v1909 = vsel %vm514, %v1887, 0
        %1911 = vmatprep.subr.bf16.mxu0 0
        %1912 = vmatpush1.bf16.msra.mxu0 %v1904
        %1913 = vmatprep.subr.bf16.mxu0 0
        %1914 = vmatpush1.bf16.msra.mxu0 %v1905
        %1915 = vmatprep.subr.bf16.mxu0 0
        %1916 = vmatpush1.bf16.msra.mxu0 0
        %1917 = vmatprep.subr.bf16.mxu0 0
        %1918 = vmatpush1.bf16.msra.mxu0 0
        %1919 = vmatprep.subr.bf16.mxu0 0
        %1920 = vmatpush1.bf16.msra.mxu0 0
        %1921 = vmatprep.subr.bf16.mxu0 0
        %1922 = vmatpush1.bf16.msra.mxu0 0
        %1923 = vmatprep.subr.bf16.mxu0 0
        %1924 = vmatpush1.bf16.msra.mxu0 0
        %1925 = vmatprep.subr.bf16.mxu0 0
        %1926 = vmatpush1.bf16.msra.mxu0 0
        %1927 = vmatprep.subr.bf16.mxu0 0
        %1928 = vmatpush1.bf16.msra.mxu0 0
        %1929 = vmatprep.subr.bf16.mxu0 0
        %1930 = vmatpush1.bf16.msra.mxu0 0
        %1931 = vmatprep.subr.bf16.mxu0 0
        %1932 = vmatpush1.bf16.msra.mxu0 0
        %1933 = vmatprep.subr.bf16.mxu0 0
        %1934 = vmatpush1.bf16.msra.mxu0 0
        %1935 = vmatprep.subr.bf16.mxu0 0
        %1936 = vmatpush1.bf16.msra.mxu0 0
        %1937 = vmatprep.subr.bf16.mxu0 0
        %1938 = vmatpush1.bf16.msra.mxu0 0
        %1939 = vmatprep.subr.bf16.mxu0 0
        %1940 = vmatpush1.bf16.msra.mxu0 0
        %1941 = vmatprep.subr.bf16.mxu0 0
        %1942 = vmatpush1.bf16.msra.mxu0 0
        %1943 = vmatprep.mubr.bf16.mxu0 0
        %1944 = vmatmul.mubr.bf16.gmra.mrb[0].mxu0 %v1909
        %v1945 = vpop.f32.mrb[0].mxu0
        %v1946 = vadd.f32 %v1895, %v1945
        %v1947 = vpop.f32.mrb[0].mxu0
        %v1948 = vpop.f32.mrb[0].mxu0
        %v1949 = vpop.f32.mrb[0].mxu0
        %1950 = vdwg.mxu0
        %v1951 = vadd.f32 %v489, %v1946
        %v1952 = vsel %vm514, %v1951, 0.0
        %1953 = vadd.xlane.f32.xlu0 %v1952
        %v1954 = vpop.xlane.xlu0 %1953
        %v1955 = vrcp.pop 32.0
        %v1956 = vmul.f32 %v1954, %v1955
        %v1957 = vmul.f32 %v1951, %v1951
        %v1958 = vsel %vm514, %v1957, 0.0
        %1959 = vadd.xlane.f32.xlu0 %v1958
        %v1960 = vpop.xlane.xlu0 %1959
        %v1961 = vmul.f32 %v1960, %v1955
        %v1962 = vmul.f32 %v1956, %v1956
        %v1963 = vsub.f32 %v1961, %v1962
        %v1964 = vsub.f32 %v1951, %v1956
        %v1965 = vadd.f32 %v1963, 1e-12
        %v1966 = vrsqrt.pop %v1965
        %v1967 = vmul.f32 %v1964, %v1966
        %v1968 = vlaneseq
        %v1969 = vshrl.u32 %v1968, 7
        %v1970 = vsub.s32 4, %v1969
        %v1971 = vrot.slane %v491, %v1970
        %v1972 = vmul.f32 %v1967, %v1971
        %v1973 = vlaneseq
        %v1974 = vshrl.u32 %v1973, 7
        %v1975 = vsub.s32 5, %v1974
        %v1976 = vrot.slane %v491, %v1975
        %v1977 = vadd.f32 %v1972, %v1976
        %v1978 = vpack.c.bf16 %v1977, %v1977
        %v1979 = vld [vmem:[%s467] sm:$0xf]
        %v1980 = vld [vmem:[%s467 + $0x4] sm:$0xf]
        %v1981 = vld [vmem:[%s467 + $0x8] sm:$0xf]
        %v1982 = vld [vmem:[%s467 + $0xc] sm:$0xf]
        %v1983 = vld [vmem:[%s470] sm:$0x1]
        %v1985 = vlaneseq
        %v1986 = vshrl.u32 %v1985, 7
        %v1987 = vsub.s32 0, %v1986
        %v1988 = vrot.slane %v1983, %v1987
        %v1994 = vunpack.c.l.b16 %v1979
        %v1995 = vunpack.c.l.b16 %v1980
        %v1996 = vunpack.c.l.b16 %v1981
        %v1997 = vunpack.c.l.b16 %v1982
        %v1998 = vpack.c.b16 %v1995, %v1994
        %v1999 = vpack.c.b16 %v1997, %v1996
        %v2003 = vsel %vm514, %v1978, 0
        %2005 = vmatprep.subr.bf16.mxu0 0
        %2006 = vmatpush1.bf16.msra.mxu0 %v1998
        %2007 = vmatprep.subr.bf16.mxu0 0
        %2008 = vmatpush1.bf16.msra.mxu0 %v1999
        %2009 = vmatprep.subr.bf16.mxu0 0
        %2010 = vmatpush1.bf16.msra.mxu0 0
        %2011 = vmatprep.subr.bf16.mxu0 0
        %2012 = vmatpush1.bf16.msra.mxu0 0
        %2013 = vmatprep.subr.bf16.mxu0 0
        %2014 = vmatpush1.bf16.msra.mxu0 0
        %2015 = vmatprep.subr.bf16.mxu0 0
        %2016 = vmatpush1.bf16.msra.mxu0 0
        %2017 = vmatprep.subr.bf16.mxu0 0
        %2018 = vmatpush1.bf16.msra.mxu0 0
        %2019 = vmatprep.subr.bf16.mxu0 0
        %2020 = vmatpush1.bf16.msra.mxu0 0
        %2021 = vmatprep.subr.bf16.mxu0 0
        %2022 = vmatpush1.bf16.msra.mxu0 0
        %2023 = vmatprep.subr.bf16.mxu0 0
        %2024 = vmatpush1.bf16.msra.mxu0 0
        %2025 = vmatprep.subr.bf16.mxu0 0
        %2026 = vmatpush1.bf16.msra.mxu0 0
        %2027 = vmatprep.subr.bf16.mxu0 0
        %2028 = vmatpush1.bf16.msra.mxu0 0
        %2029 = vmatprep.subr.bf16.mxu0 0
        %2030 = vmatpush1.bf16.msra.mxu0 0
        %2031 = vmatprep.subr.bf16.mxu0 0
        %2032 = vmatpush1.bf16.msra.mxu0 0
        %2033 = vmatprep.subr.bf16.mxu0 0
        %2034 = vmatpush1.bf16.msra.mxu0 0
        %2035 = vmatprep.subr.bf16.mxu0 0
        %2036 = vmatpush1.bf16.msra.mxu0 0
        %2037 = vmatprep.mubr.bf16.mxu0 0
        %2038 = vmatmul.mubr.bf16.gmra.mrb[0].mxu0 %v2003
        %v2039 = vpop.f32.mrb[0].mxu0
        %v2040 = vadd.f32 %v1988, %v2039
        %v2041 = vpop.f32.mrb[0].mxu0
        %v2042 = vpop.f32.mrb[0].mxu0
        %v2043 = vpop.f32.mrb[0].mxu0
        %2044 = vdwg.mxu0
        %v2045 = vmul.f32 %v2040, 0.5
        %v2046 = vmul.f32 %v2040, 0.044715
        %v2047 = vmul.f32 %v2046, %v2040
        %v2048 = vmul.f32 %v2047, %v2040
        %v2049 = vadd.f32 %v2040, %v2048
        %v2050 = vmul.f32 %v2049, 0.7978846
        %v2051 = vtanh.pop %v2050
        %v2052 = vadd.f32 %v2051, 1.0
        %v2053 = vmul.f32 %v2045, %v2052
        %v2054 = vpack.c.bf16 %v2053, %v2053
        %v2055 = vld [vmem:[%s475] sm:$0xf]
        %v2056 = vld [vmem:[%s475 + $0x4] sm:$0xf]
        %v2057 = vld [vmem:[%s475 + $0x8] sm:$0xf]
        %v2058 = vld [vmem:[%s475 + $0xc] sm:$0xf]
        %v2059 = vld [vmem:[%s475 + $0x10] sm:$0xf]
        %v2060 = vld [vmem:[%s475 + $0x14] sm:$0xf]
        %v2061 = vld [vmem:[%s475 + $0x18] sm:$0xf]
        %v2062 = vld [vmem:[%s475 + $0x1c] sm:$0xf]
        %v2063 = vlaneseq
        %v2064 = vshrl.u32 %v2063, 7
        %v2065 = vsub.s32 6, %v2064
        %v2066 = vrot.slane %v491, %v2065
        %v2075 = vunpack.c.l.b16 %v2055
        %v2076 = vunpack.c.l.b16 %v2056
        %v2077 = vunpack.c.l.b16 %v2057
        %v2078 = vunpack.c.l.b16 %v2058
        %v2079 = vunpack.c.l.b16 %v2059
        %v2080 = vunpack.c.l.b16 %v2060
        %v2081 = vunpack.c.l.b16 %v2061
        %v2082 = vunpack.c.l.b16 %v2062
        %v2083 = vpack.c.b16 %v2076, %v2075
        %v2084 = vpack.c.b16 %v2078, %v2077
        %v2085 = vpack.c.b16 %v2080, %v2079
        %v2086 = vpack.c.b16 %v2082, %v2081
        %vm2091 = vcmask 523264
        %v2093 = vsel %vm2091, %v2054, 0
        %2095 = vmatprep.subr.bf16.mxu0 0
        %2096 = vmatpush1.bf16.msra.mxu0 %v2083
        %2097 = vmatprep.subr.bf16.mxu0 0
        %2098 = vmatpush1.bf16.msra.mxu0 %v2084
        %2099 = vmatprep.subr.bf16.mxu0 0
        %2100 = vmatpush1.bf16.msra.mxu0 %v2085
        %2101 = vmatprep.subr.bf16.mxu0 0
        %2102 = vmatpush1.bf16.msra.mxu0 %v2086
        %2103 = vmatprep.subr.bf16.mxu0 0
        %2104 = vmatpush1.bf16.msra.mxu0 0
        %2105 = vmatprep.subr.bf16.mxu0 0
        %2106 = vmatpush1.bf16.msra.mxu0 0
        %2107 = vmatprep.subr.bf16.mxu0 0
        %2108 = vmatpush1.bf16.msra.mxu0 0
        %2109 = vmatprep.subr.bf16.mxu0 0
        %2110 = vmatpush1.bf16.msra.mxu0 0
        %2111 = vmatprep.subr.bf16.mxu0 0
        %2112 = vmatpush1.bf16.msra.mxu0 0
        %2113 = vmatprep.subr.bf16.mxu0 0
        %2114 = vmatpush1.bf16.msra.mxu0 0
        %2115 = vmatprep.subr.bf16.mxu0 0
        %2116 = vmatpush1.bf16.msra.mxu0 0
        %2117 = vmatprep.subr.bf16.mxu0 0
        %2118 = vmatpush1.bf16.msra.mxu0 0
        %2119 = vmatprep.subr.bf16.mxu0 0
        %2120 = vmatpush1.bf16.msra.mxu0 0
        %2121 = vmatprep.subr.bf16.mxu0 0
        %2122 = vmatpush1.bf16.msra.mxu0 0
        %2123 = vmatprep.subr.bf16.mxu0 0
        %2124 = vmatpush1.bf16.msra.mxu0 0
        %2125 = vmatprep.subr.bf16.mxu0 0
        %2126 = vmatpush1.bf16.msra.mxu0 0
        %2127 = vmatprep.mubr.bf16.mxu0 0
        %2128 = vmatmul.mubr.bf16.gmra.mrb[0].mxu0 %v2093
        %v2129 = vpop.f32.mrb[0].mxu0
        %v2130 = vadd.f32 %v2066, %v2129
        %v2131 = vpop.f32.mrb[0].mxu0
        %v2132 = vpop.f32.mrb[0].mxu0
        %v2133 = vpop.f32.mrb[0].mxu0
        %2134 = vdwg.mxu0
        %v2135 = vadd.f32 %v1977, %v2130
        %v2136 = vsel %vm514, %v2135, 0.0
        %2137 = vadd.xlane.f32.xlu0 %v2136
        %v2138 = vpop.xlane.xlu0 %2137
        %v2139 = vmul.f32 %v2138, %v1955
        %v2140 = vmul.f32 %v2135, %v2135
        %v2141 = vsel %vm514, %v2140, 0.0
        %2142 = vadd.xlane.f32.xlu0 %v2141
        %v2143 = vpop.xlane.xlu0 %2142
        %v2144 = vmul.f32 %v2143, %v1955
        %v2145 = vmul.f32 %v2139, %v2139
        %v2146 = vsub.f32 %v2144, %v2145
        %v2147 = vsub.f32 %v2135, %v2139
        %v2148 = vadd.f32 %v2146, 1e-12
        %v2149 = vrsqrt.pop %v2148
        %v2150 = vmul.f32 %v2147, %v2149
        %v2151 = vlaneseq
        %v2152 = vshrl.u32 %v2151, 7
        %v2153 = vsub.s32 7, %v2152
        %v2154 = vrot.slane %v491, %v2153
        %v2155 = vmul.f32 %v2150, %v2154
        %v2156 = vlaneseq
        %v2157 = vshrl.u32 %v2156, 7
        %v2158 = vsub.s32 0, %v2157
        %v2159 = vrot.slane %v492, %v2158
        %v2160 = vadd.f32 %v2155, %v2159
        %2161 = vst.msk [vmem:[%s452] sm:$0xff] %vm514, %v2160
        %s2162 = sand.u32 %s256, 1
        %s2163 = scalar_lea.sflag [#allocation4], %s2162
        %s2164 = sand.u32 %s256, 1
        %s2165 = smul.addr %s2164, 8
        %s2166 = scalar_lea.vmem [#allocation7], %s2165
        // Predicated region
        $region65: #{tpu_custom_call.1} parent=51 // pred_check
          %p2167 = pneg %p266
        $region66: #{tpu_custom_call.1} parent=51 // pred_check_branch
          %2169 = sbr.rel (%p2167) target = $region68
        $region67: #{tpu_custom_call.1} parent=51 // pred_region
          %s2171 = ssub.s32 128, 128
          %2172 = vsyncadd %s2163, %s2171
          %s2173 = smul.addr %s32, 128
          %s2174 = scalar_lea.hbm %s8, %s2173
          %s2176 = sshll.u32 %s2166, 4
          %s2177 = int_to_ptr.vmem [resolvable:$true] %s2176
          %2179 = dma.vmem_to_hbm [thread:$0]  %s2177, 128, %s2174, %s2163
        $region68: #{tpu_custom_call.1} parent=51 // pred_fallthru
          _
      $region52: #{tpu_custom_call.1} parent=5 // pred_fallthru
        _
      %p2180 = scmp.le.s32.totalorder 2, %s23
      // Predicated region
      $region69: #{tpu_custom_call.1} parent=5 // pred_check
        %p2181 = pneg %p2180
      $region70: #{tpu_custom_call.1} parent=5 // pred_check_branch
        %2183 = sbr.rel (%p2181) target = $region72
      $region71: #{tpu_custom_call.1} parent=5 // pred_region
        %s2184 = ssub.s32 %s23, 2
        // Predicated region
        $region73: #{tpu_custom_call.1} parent=71 // pred_check
          %p2185 = pneg %p272
        $region74: #{tpu_custom_call.1} parent=71 // pred_check_branch
          %2187 = sbr.rel (%p2185) target = $region76
        $region75: #{tpu_custom_call.1} parent=71 // pred_region
          %s2188 = sand.u32 %s257, 1
          %s2189 = scalar_lea.sflag [#allocation4], %s2188
          %s2190 = sand.u32 %s257, 1
          %s2191 = smul.addr %s2190, 8
          %s2192 = scalar_lea.vmem [#allocation7], %s2191
          %2193 = dma.done %s2189, 128
        $region76: #{tpu_custom_call.1} parent=71 // pred_fallthru
          _
      $region72: #{tpu_custom_call.1} parent=5 // pred_fallthru
        _
    $region6: #{tpu_custom_call.1} parent=1 // loop_footer
      %s27 = sadd.s32 1, %s23
    $region7: #{tpu_custom_call.1} parent=1 // loop_footer_branch
      %22 = sbr.rel target = $region3
    $region8: #{tpu_custom_call.1} parent=1 // loop_exit
      _
    %2194 = vsyncpa [#allocation3], 1
    %s2195 = scalar_lea.sflag [#allocation3], 1
    %2196 = vsyncpa %s2195, 1
    %2197 = vsyncpa [#allocation6], 1
    %s2198 = scalar_lea.sflag [#allocation6], 1
    %2199 = vsyncpa %s2198, 1
    %2200 = vsyncpa [#allocation4], 1
    %s2201 = scalar_lea.sflag [#allocation4], 1
    %2202 = vsyncpa %s2201, 1

</llo_original>
